<compile_context>
chip_gen: v7x
topology: tpu7x:2x2x1
jax: 0.10.0
libtpu: 0.0.40
codegen_flags: <defaults>
</compile_context>

<pallas_src>
import functools

import jax
import jax.numpy as jnp
from jax.experimental import pallas as pl
from jax.experimental.pallas import tpu as pltpu

EMBED_DIM = 1024
HIDDEN = 512
LATENT_DIM = 256
LN_EPS = 1e-5
_N_VEC_ROWS = 8  # 7 packed bias/LN rows + 1 pad row (sublane aligned)
_TILE_CANDIDATES = (1024, 512, 256, 128, 64, 32, 16, 8)
_MAX_PAD_FRACTION = 0.125


def _round_up(v, m):
    return ((v + m - 1) // m) * m


def _layernorm(x, gamma, beta):
    # Two-pass LayerNorm (mean, then centered variance), biased variance as in
    # PyTorch nn.LayerNorm.  All in f32; rsqrt lowers to the EUP.
    mean = jnp.mean(x, axis=-1, keepdims=True)
    xc = x - mean
    var = jnp.mean(xc * xc, axis=-1, keepdims=True)
    return xc * jax.lax.rsqrt(var + LN_EPS) * gamma + beta


def _silu(x):
    return x * jax.nn.sigmoid(x)


def mlp_kernel(x_ref, w1_ref, w2_ref, w3_ref, vec_ref, o_ref):
    # In-kernel bf16 cast of the x tile (VPU; hides under MXU work).
    x = x_ref[...].astype(w1_ref.dtype)          # (TB, E)
    vecs = vec_ref[...]                          # (8, HIDDEN) f32
    b1, g1, be1 = vecs[0:1], vecs[1:2], vecs[2:3]
    b2, g2, be2 = vecs[3:4], vecs[4:5], vecs[5:6]
    b3 = vecs[6:7, :LATENT_DIM]

    # Linear(E, 512) + LayerNorm + SiLU
    h = jnp.dot(x, w1_ref[...], preferred_element_type=jnp.float32) + b1
    h = _silu(_layernorm(h, g1, be1))

    # Linear(512, 512) + LayerNorm + SiLU
    h = jnp.dot(h.astype(w2_ref.dtype), w2_ref[...],
                preferred_element_type=jnp.float32) + b2
    h = _silu(_layernorm(h, g2, be2))

    # Linear(512, latent_dim)
    out = jnp.dot(h.astype(w3_ref.dtype), w3_ref[...],
                  preferred_element_type=jnp.float32) + b3
    o_ref[...] = out.astype(o_ref.dtype)


@functools.lru_cache(maxsize=1)
def _physical_vmem_bytes():
    try:
        return int(pltpu.get_tpu_info().vmem_capacity_bytes)
    except Exception:  # hardware query unavailable (e.g. interpret mode)
        return 64 * 1024 * 1024  # conservative: v7x per-TC VMEM


def _vmem_limit_bytes(tile):
    bf16, f32 = 2, 4
    weights = (EMBED_DIM * HIDDEN + HIDDEN * HIDDEN
               + HIDDEN * LATENT_DIM) * bf16 + _N_VEC_ROWS * HIDDEN * f32
    x_bufs = 2 * tile * EMBED_DIM * f32            # double-buffered f32 x tile
    o_bufs = 2 * tile * LATENT_DIM * f32           # double-buffered f32 out tile
    interm = tile * (EMBED_DIM * bf16 + 4 * HIDDEN * f32)  # x cast + h temps
    est = weights + x_bufs + o_bufs + interm + (8 << 20)   # headroom
    return int(min(est, max(_physical_vmem_bytes() - (4 << 20), 16 << 20)))


def _choose_tile(b):
    # Largest candidate tile whose zero-pad fraction stays small.
    for tile in _TILE_CANDIDATES:
        padded = _round_up(b, tile)
        if (padded - b) / padded <= _MAX_PAD_FRACTION:
            return tile
    return 8


@functools.lru_cache(maxsize=1)
def _supports_single_buffering():
    """Explicit capability check for pipeline_mode=pl.Buffered(1).

    One-time constructor probe + tiny AOT lowering/compile probe, so the real
    kernel never hides its own failures behind a fallback path.
    """
    try:
        spec = pl.BlockSpec((8, 128), lambda i: (0, 0),
                            pipeline_mode=pl.Buffered(1))
    except (AttributeError, TypeError):
        return False

    def _probe(x_ref, o_ref):
        o_ref[...] = x_ref[...]

    probe_call = pl.pallas_call(
        _probe,
        out_shape=jax.ShapeDtypeStruct((8, 128), jnp.float32),
        grid_spec=pltpu.PrefetchScalarGridSpec(
            num_scalar_prefetch=0,
            grid=(1,),
            in_specs=[spec],
            out_specs=pl.BlockSpec((8, 128), lambda i: (0, 0)),
        ),
    )
    try:
        jax.jit(probe_call).lower(
            jax.ShapeDtypeStruct((8, 128), jnp.float32)).compile()
        return True
    except Exception:  # one-time AOT probe only; fall back to default buffering
        return False


def _build_call(tile, padded_b):
    single_buffer = _supports_single_buffering()

    def rep(shape):
        # Constant index_map: one fetch suffices; skip double-buffering the
        # ~1.77 MiB of bf16 weights when the JAX build supports it.
        if single_buffer:
            return pl.BlockSpec(shape, lambda i: (0, 0),
                                pipeline_mode=pl.Buffered(1))
        return pl.BlockSpec(shape, lambda i: (0, 0))

    return pl.pallas_call(
        mlp_kernel,
        out_shape=jax.ShapeDtypeStruct((padded_b, LATENT_DIM), jnp.float32),
        grid_spec=pltpu.PrefetchScalarGridSpec(
            num_scalar_prefetch=0,
            grid=(padded_b // tile,),
            in_specs=[
                pl.BlockSpec((tile, EMBED_DIM), lambda i: (i, 0)),  # x (f32)
                rep((EMBED_DIM, HIDDEN)),                           # w1 (bf16)
                rep((HIDDEN, HIDDEN)),                              # w2 (bf16)
                rep((HIDDEN, LATENT_DIM)),                          # w3 (bf16)
                rep((_N_VEC_ROWS, HIDDEN)),                         # biases + LN
            ],
            out_specs=pl.BlockSpec((tile, LATENT_DIM), lambda i: (i, 0)),
        ),
        compiler_params=pltpu.CompilerParams(
            dimension_semantics=("parallel",),
            vmem_limit_bytes=_vmem_limit_bytes(tile),
        ),
    )


def prepare_params(params, compute_dtype=jnp.bfloat16):
    """One-time conversion of raw f32 params to kernel-ready form.

    Call once outside the per-step path so the bf16 weight casts and the
    bias/LayerNorm vector packing are not re-run on every forward call.
    """
    w1, b1, g1, be1, w2, b2, g2, be2, w3, b3 = params
    rows = [r.reshape(1, HIDDEN).astype(jnp.float32)
            for r in (b1, g1, be1, b2, g2, be2)]
    b3_row = jnp.zeros((1, HIDDEN), jnp.float32).at[:, :LATENT_DIM].set(
        b3.reshape(1, LATENT_DIM).astype(jnp.float32))
    pad = jnp.zeros((_N_VEC_ROWS - 7, HIDDEN), jnp.float32)
    packed = jnp.concatenate(rows + [b3_row, pad], axis=0)  # (8, HIDDEN)
    return (w1.astype(compute_dtype),
            w2.astype(compute_dtype),
            w3.astype(compute_dtype),
            packed)


def text_condition_projector(x, prepared_params):
    """x: (B, EMBED_DIM) f32 -> (B, LATENT_DIM) f32."""
    B, E = x.shape
    assert E == EMBED_DIM
    w1, w2, w3, packed = prepared_params

    tile = _choose_tile(B)
    padded_b = _round_up(B, tile)
    xp = x if padded_b == B else jnp.pad(x, ((0, padded_b - B), (0, 0)))

    out = _build_call(tile, padded_b)(xp, w1, w2, w3, packed)
    return out[:B]


def init_params(key):
    """Deterministic synthetic params; shapes match the PyTorch module."""
    ks = jax.random.split(key, 3)

    def linear(k, fan_in, fan_out):
        # PyTorch-style uniform(-1/sqrt(fan_in), 1/sqrt(fan_in)); weight stored
        # as (in, out) so the kernel computes x @ W.
        bound = 1.0 / jnp.sqrt(fan_in)
        kw, kb = jax.random.split(k)
        w = jax.random.uniform(kw, (fan_in, fan_out), jnp.float32, -bound, bound)
        b = jax.random.uniform(kb, (1, fan_out), jnp.float32, -bound, bound)
        return w, b

    w1, b1 = linear(ks[0], EMBED_DIM, HIDDEN)
    w2, b2 = linear(ks[1], HIDDEN, HIDDEN)
    w3, b3 = linear(ks[2], HIDDEN, LATENT_DIM)
    g1 = jnp.ones((1, HIDDEN), jnp.float32)
    be1 = jnp.zeros((1, HIDDEN), jnp.float32)
    g2 = jnp.ones((1, HIDDEN), jnp.float32)
    be2 = jnp.zeros((1, HIDDEN), jnp.float32)
    return (w1, b1, g1, be1, w2, b2, g2, be2, w3, b3)


def reference_forward(x, params):
    """Pure-JAX f32 reference, written independently of the kernel helpers."""
    (w1, b1, g1, be1, w2, b2, g2, be2, w3, b3) = params

    def ln(v, g, b):
        m = jnp.mean(v, axis=-1, keepdims=True)
        s = jnp.var(v, axis=-1, keepdims=True)         # biased, like PyTorch LN
        return (v - m) / jnp.sqrt(s + LN_EPS) * g + b

    h = x @ w1 + b1
    h = jax.nn.silu(ln(h, g1, be1))
    h = h @ w2 + b2
    h = jax.nn.silu(ln(h, g2, be2))
    return h @ w3 + b3


if __name__ == "__main__":
    key = jax.random.PRNGKey(0)
    kx, kp = jax.random.split(key)

    B = 8  # small batch of text embeddings
    x = jax.random.normal(kx, (B, EMBED_DIM), jnp.float32)
    params = init_params(kp)
    prepared = prepare_params(params)  # one-time bf16 cast + vector packing

    out = text_condition_projector(x, prepared)
    out = jax.block_until_ready(out)

    ref = reference_forward(x, params)
    assert out.shape == (B, LATENT_DIM)
    # bf16 weights / x-tiles with f32 accumulation -> loose tolerance vs f32.
    max_err = float(jnp.max(jnp.abs(out - ref)))
    assert jnp.allclose(out, ref, atol=5e-2, rtol=5e-2), max_err

    print("KERNEL_OK")
</pallas_src>

<mosaic_0001>
module attributes {stable_mosaic.version = 11 : i64} {
  func.func @mlp_kernel(%arg0: i32, %arg1: memref<8x1024xf32, #tpu.memory_space<vmem>>, %arg2: memref<1024x512xbf16, #tpu.memory_space<vmem>>, %arg3: memref<512x512xbf16, #tpu.memory_space<vmem>>, %arg4: memref<512x256xbf16, #tpu.memory_space<vmem>>, %arg5: memref<8x512xf32, #tpu.memory_space<vmem>>, %arg6: memref<8x256xf32, #tpu.memory_space<vmem>>) attributes {dimension_semantics = [#tpu.dimension_semantics<parallel>], iteration_bounds = array<i64: 1>, scalar_prefetch = 0 : i64, scratch_operands = 0 : i64, tpu.core_type = #tpu.core_type<tc>, window_params = [{transform_indices = @transform_0, window_bounds = array<i64: 8, 1024>}, {pipeline_mode = #tpu.pipeline_mode<synchronous>, transform_indices = @transform_1, window_bounds = array<i64: 1024, 512>}, {pipeline_mode = #tpu.pipeline_mode<synchronous>, transform_indices = @transform_2, window_bounds = array<i64: 512, 512>}, {pipeline_mode = #tpu.pipeline_mode<synchronous>, transform_indices = @transform_3, window_bounds = array<i64: 512, 256>}, {pipeline_mode = #tpu.pipeline_mode<synchronous>, transform_indices = @transform_4, window_bounds = array<i64: 8, 512>}, {transform_indices = @transform_5, window_bounds = array<i64: 8, 256>}]} {
    %c0 = arith.constant 0 : index
    %c0_0 = arith.constant 0 : index
    %0 = vector.load %arg1[%c0, %c0_0] : memref<8x1024xf32, #tpu.memory_space<vmem>>, vector<8x1024xf32>
    %1 = arith.truncf %0 : vector<8x1024xf32> to vector<8x1024xbf16>
    %c0_1 = arith.constant 0 : index
    %c0_2 = arith.constant 0 : index
    %2 = vector.load %arg5[%c0_1, %c0_2] : memref<8x512xf32, #tpu.memory_space<vmem>>, vector<8x512xf32>
    %3 = vector.extract_strided_slice %2 {offsets = [0, 0], sizes = [1, 512], strides = [1, 1]} : vector<8x512xf32> to vector<1x512xf32>
    %4 = vector.extract_strided_slice %2 {offsets = [1, 0], sizes = [1, 512], strides = [1, 1]} : vector<8x512xf32> to vector<1x512xf32>
    %5 = vector.extract_strided_slice %2 {offsets = [2, 0], sizes = [1, 512], strides = [1, 1]} : vector<8x512xf32> to vector<1x512xf32>
    %6 = vector.extract_strided_slice %2 {offsets = [3, 0], sizes = [1, 512], strides = [1, 1]} : vector<8x512xf32> to vector<1x512xf32>
    %7 = vector.extract_strided_slice %2 {offsets = [4, 0], sizes = [1, 512], strides = [1, 1]} : vector<8x512xf32> to vector<1x512xf32>
    %8 = vector.extract_strided_slice %2 {offsets = [5, 0], sizes = [1, 512], strides = [1, 1]} : vector<8x512xf32> to vector<1x512xf32>
    %9 = vector.extract_strided_slice %2 {offsets = [6, 0], sizes = [1, 256], strides = [1, 1]} : vector<8x512xf32> to vector<1x256xf32>
    %c0_3 = arith.constant 0 : index
    %c0_4 = arith.constant 0 : index
    %10 = vector.load %arg2[%c0_3, %c0_4] : memref<1024x512xbf16, #tpu.memory_space<vmem>>, vector<1024x512xbf16>
    %cst = arith.constant dense<0.000000e+00> : vector<8x512xf32>
    %11 = tpu.matmul %1, %10, %cst {dimension_numbers = #tpu.dot_dimension_numbers<[1], [0], [0], [1], [0, 0, 1, 1], [], []>} : vector<8x1024xbf16>, vector<1024x512xbf16>, vector<8x512xf32> -> vector<8x512xf32>
    %12 = vector.broadcast %3 : vector<1x512xf32> to vector<8x512xf32>
    %13 = arith.addf %11, %12 : vector<8x512xf32>
    %cst_5 = arith.constant dense<0.000000e+00> : vector<8xf32>
    %14 = vector.multi_reduction <add>, %13, %cst_5 [1] : vector<8x512xf32> to vector<8xf32>
    %15 = vector.shape_cast %14 : vector<8xf32> to vector<8x1xf32>
    %cst_6 = arith.constant 5.120000e+02 : f32
    %16 = vector.broadcast %cst_6 : f32 to vector<8x1xf32>
    %17 = arith.divf %15, %16 : vector<8x1xf32>
    %18 = vector.broadcast %17 : vector<8x1xf32> to vector<8x512xf32>
    %19 = arith.subf %13, %18 : vector<8x512xf32>
    %20 = arith.mulf %19, %19 : vector<8x512xf32>
    %cst_7 = arith.constant dense<0.000000e+00> : vector<8xf32>
    %21 = vector.multi_reduction <add>, %20, %cst_7 [1] : vector<8x512xf32> to vector<8xf32>
    %22 = vector.shape_cast %21 : vector<8xf32> to vector<8x1xf32>
    %cst_8 = arith.constant 5.120000e+02 : f32
    %23 = vector.broadcast %cst_8 : f32 to vector<8x1xf32>
    %24 = arith.divf %22, %23 : vector<8x1xf32>
    %cst_9 = arith.constant 9.99999974E-6 : f32
    %25 = vector.broadcast %cst_9 : f32 to vector<8x1xf32>
    %26 = arith.addf %24, %25 : vector<8x1xf32>
    %27 = math.rsqrt %26 : vector<8x1xf32>
    %28 = vector.broadcast %27 : vector<8x1xf32> to vector<8x512xf32>
    %29 = arith.mulf %19, %28 : vector<8x512xf32>
    %30 = vector.broadcast %4 : vector<1x512xf32> to vector<8x512xf32>
    %31 = arith.mulf %29, %30 : vector<8x512xf32>
    %32 = vector.broadcast %5 : vector<1x512xf32> to vector<8x512xf32>
    %33 = arith.addf %31, %32 : vector<8x512xf32>
    %34 = arith.negf %33 : vector<8x512xf32>
    %35 = math.exp %34 : vector<8x512xf32>
    %cst_10 = arith.constant 1.000000e+00 : f32
    %36 = vector.broadcast %cst_10 : f32 to vector<8x512xf32>
    %37 = arith.addf %36, %35 : vector<8x512xf32>
    %38 = arith.divf %36, %37 : vector<8x512xf32>
    %39 = arith.mulf %33, %38 : vector<8x512xf32>
    %40 = arith.truncf %39 : vector<8x512xf32> to vector<8x512xbf16>
    %c0_11 = arith.constant 0 : index
    %c0_12 = arith.constant 0 : index
    %41 = vector.load %arg3[%c0_11, %c0_12] : memref<512x512xbf16, #tpu.memory_space<vmem>>, vector<512x512xbf16>
    %cst_13 = arith.constant dense<0.000000e+00> : vector<8x512xf32>
    %42 = tpu.matmul %40, %41, %cst_13 {dimension_numbers = #tpu.dot_dimension_numbers<[1], [0], [0], [1], [0, 0, 1, 1], [], []>} : vector<8x512xbf16>, vector<512x512xbf16>, vector<8x512xf32> -> vector<8x512xf32>
    %43 = vector.broadcast %6 : vector<1x512xf32> to vector<8x512xf32>
    %44 = arith.addf %42, %43 : vector<8x512xf32>
    %cst_14 = arith.constant dense<0.000000e+00> : vector<8xf32>
    %45 = vector.multi_reduction <add>, %44, %cst_14 [1] : vector<8x512xf32> to vector<8xf32>
    %46 = vector.shape_cast %45 : vector<8xf32> to vector<8x1xf32>
    %cst_15 = arith.constant 5.120000e+02 : f32
    %47 = vector.broadcast %cst_15 : f32 to vector<8x1xf32>
    %48 = arith.divf %46, %47 : vector<8x1xf32>
    %49 = vector.broadcast %48 : vector<8x1xf32> to vector<8x512xf32>
    %50 = arith.subf %44, %49 : vector<8x512xf32>
    %51 = arith.mulf %50, %50 : vector<8x512xf32>
    %cst_16 = arith.constant dense<0.000000e+00> : vector<8xf32>
    %52 = vector.multi_reduction <add>, %51, %cst_16 [1] : vector<8x512xf32> to vector<8xf32>
    %53 = vector.shape_cast %52 : vector<8xf32> to vector<8x1xf32>
    %cst_17 = arith.constant 5.120000e+02 : f32
    %54 = vector.broadcast %cst_17 : f32 to vector<8x1xf32>
    %55 = arith.divf %53, %54 : vector<8x1xf32>
    %cst_18 = arith.constant 9.99999974E-6 : f32
    %56 = vector.broadcast %cst_18 : f32 to vector<8x1xf32>
    %57 = arith.addf %55, %56 : vector<8x1xf32>
    %58 = math.rsqrt %57 : vector<8x1xf32>
    %59 = vector.broadcast %58 : vector<8x1xf32> to vector<8x512xf32>
    %60 = arith.mulf %50, %59 : vector<8x512xf32>
    %61 = vector.broadcast %7 : vector<1x512xf32> to vector<8x512xf32>
    %62 = arith.mulf %60, %61 : vector<8x512xf32>
    %63 = vector.broadcast %8 : vector<1x512xf32> to vector<8x512xf32>
    %64 = arith.addf %62, %63 : vector<8x512xf32>
    %65 = arith.negf %64 : vector<8x512xf32>
    %66 = math.exp %65 : vector<8x512xf32>
    %cst_19 = arith.constant 1.000000e+00 : f32
    %67 = vector.broadcast %cst_19 : f32 to vector<8x512xf32>
    %68 = arith.addf %67, %66 : vector<8x512xf32>
    %69 = arith.divf %67, %68 : vector<8x512xf32>
    %70 = arith.mulf %64, %69 : vector<8x512xf32>
    %71 = arith.truncf %70 : vector<8x512xf32> to vector<8x512xbf16>
    %c0_20 = arith.constant 0 : index
    %c0_21 = arith.constant 0 : index
    %72 = vector.load %arg4[%c0_20, %c0_21] : memref<512x256xbf16, #tpu.memory_space<vmem>>, vector<512x256xbf16>
    %cst_22 = arith.constant dense<0.000000e+00> : vector<8x256xf32>
    %73 = tpu.matmul %71, %72, %cst_22 {dimension_numbers = #tpu.dot_dimension_numbers<[1], [0], [0], [1], [0, 0, 1, 1], [], []>} : vector<8x512xbf16>, vector<512x256xbf16>, vector<8x256xf32> -> vector<8x256xf32>
    %74 = vector.broadcast %9 : vector<1x256xf32> to vector<8x256xf32>
    %75 = arith.addf %73, %74 : vector<8x256xf32>
    %c0_23 = arith.constant 0 : index
    %c0_24 = arith.constant 0 : index
    %76 = vector.load %arg6[%c0_23, %c0_24] : memref<8x256xf32, #tpu.memory_space<vmem>>, vector<8x256xf32>
    tpu.vector_store %arg6[%c0_23, %c0_24], %75 {strides = array<i32>} : memref<8x256xf32, #tpu.memory_space<vmem>>, vector<8x256xf32>,
    return
  }
  func.func @transform_0(%arg0: i32) -> (i32, i32) {
    %c0_i32 = arith.constant 0 : i32
    %c0_i32_0 = arith.constant 0 : i32
    return %arg0, %c0_i32 : i32, i32
  }
  func.func @transform_1(%arg0: i32) -> (i32, i32) {
    %c0_i32 = arith.constant 0 : i32
    %c0_i32_0 = arith.constant 0 : i32
    %c0_i32_1 = arith.constant 0 : i32
    return %c0_i32, %c0_i32_0 : i32, i32
  }
  func.func @transform_2(%arg0: i32) -> (i32, i32) {
    %c0_i32 = arith.constant 0 : i32
    %c0_i32_0 = arith.constant 0 : i32
    %c0_i32_1 = arith.constant 0 : i32
    return %c0_i32, %c0_i32_0 : i32, i32
  }
  func.func @transform_3(%arg0: i32) -> (i32, i32) {
    %c0_i32 = arith.constant 0 : i32
    %c0_i32_0 = arith.constant 0 : i32
    %c0_i32_1 = arith.constant 0 : i32
    return %c0_i32, %c0_i32_0 : i32, i32
  }
  func.func @transform_4(%arg0: i32) -> (i32, i32) {
    %c0_i32 = arith.constant 0 : i32
    %c0_i32_0 = arith.constant 0 : i32
    %c0_i32_1 = arith.constant 0 : i32
    return %c0_i32, %c0_i32_0 : i32, i32
  }
  func.func @transform_5(%arg0: i32) -> (i32, i32) {
    %c0_i32 = arith.constant 0 : i32
    %c0_i32_0 = arith.constant 0 : i32
    return %arg0, %c0_i32 : i32, i32
  }
}

</mosaic_0001>

<llo_original>
// kernel: tpu_custom_call.1
$region0: #{tpu_custom_call.1}
  #allocation0 [shape = 'u32[]', space=smem, size = 0x4, offset = 0x4, fixed_abs, tag = 'smem constant byte address 0x4 - core index']
  #allocation1 [shape = 'u32[144,128]{1,0:T(1,128)}', space=vmem, size = 0x12000, scoped, tag = 'internal scratch']
  %s0 = inlined_call_operand.hbm [shape: f32[8,1024], index: 0, kind: input, shape index: {}]
  %s1 = inlined_call_operand.hbm [shape: bf16[1024,512], index: 1, kind: input, shape index: {}]
  %s2 = inlined_call_operand.hbm [shape: bf16[512,512], index: 2, kind: input, shape index: {}]
  %s3 = inlined_call_operand.hbm [shape: bf16[512,256], index: 3, kind: input, shape index: {}]
  %s4 = inlined_call_operand.hbm [shape: f32[8,512], index: 4, kind: input, shape index: {}]
  %s5 = inlined_call_operand.hbm [shape: f32[8,256], index: 5, kind: output, shape index: {}]
  %s6 = sld [smem:[#allocation0]]
  $region50: #{tpu_custom_call.1} parent=0
    _
  %s8 = ssub.s32 1, %s6
  %s9 = scalar_select 0, %s8, %s6
  $region1: #{tpu_custom_call.1} parent=0
    #allocation2 [shape = 'u8[32768]{0}', space=vmem, size = 0x8000, scoped, tag = 'input window, operand 0, single buffered']
    #allocation3 [shape = 's32[1]{0}', space=sflag, size = 0x4, scoped, tag = 'scoped memory for tpu_custom_call.1']
    #allocation4 [shape = 's32[1]{0}', space=sflag, size = 0x4, scoped, tag = 'scoped memory for tpu_custom_call.1']
    #allocation5 [shape = 'u8[1048576]{0}', space=vmem, size = 0x100000, scoped, tag = 'input window, operand 1, single buffered']
    #allocation6 [shape = 's32[1]{0}', space=sflag, size = 0x4, scoped, tag = 'scoped memory for tpu_custom_call.1']
    #allocation7 [shape = 'u8[524288]{0}', space=vmem, size = 0x80000, scoped, tag = 'input window, operand 2, single buffered']
    #allocation8 [shape = 'u8[262144]{0}', space=vmem, size = 0x40000, scoped, tag = 'input window, operand 3, single buffered']
    #allocation9 [shape = 's32[1]{0}', space=sflag, size = 0x4, scoped, tag = 'scoped memory for tpu_custom_call.1']
    #allocation10 [shape = 'u8[16384]{0}', space=vmem, size = 0x4000, scoped, tag = 'input window, operand 4, single buffered']
    #allocation11 [shape = 'u8[8192]{0}', space=vmem, size = 0x2000, scoped, tag = 'output window, operand 0, single buffered']
    %10 = vsyncpa [#allocation3], 0
    %11 = vsyncpa [#allocation6], 0
    %12 = vsyncpa [#allocation9], 0
    %13 = vsyncpa [#allocation4], 0
    // Predicated region
    $region2: #{tpu_custom_call.1} parent=1 // pred_check
      _
    $region3: #{tpu_custom_call.1} parent=1 // pred_check_branch
      %15 = sbr.rel (0) target = $region5
    $region4: #{tpu_custom_call.1} parent=1 // pred_region
      %s17 = ssub.s32 1024, 1024
      %18 = vsyncadd [#allocation3], %s17
      %s20 = sshll.u32 [#allocation2], 4
      %s21 = int_to_ptr.vmem [resolvable:$true] %s20
      %23 = dma.hbm_to_vmem [thread:$0]  %s0, 1024, %s21, [#allocation3]
    $region5: #{tpu_custom_call.1} parent=1 // pred_fallthru
      _
    // Predicated region
    $region6: #{tpu_custom_call.1} parent=1 // pred_check
      _
    $region7: #{tpu_custom_call.1} parent=1 // pred_check_branch
      %25 = sbr.rel (0) target = $region9
    $region8: #{tpu_custom_call.1} parent=1 // pred_region
      %s27 = ssub.s32 32768, 32768
      %28 = vsyncadd [#allocation6], %s27
      %s29 = sshll.u32 [#allocation5], 4
      %s30 = int_to_ptr.vmem [resolvable:$true] %s29
      %35 = dma.hbm_to_vmem [thread:$0]  %s1, 32768, %s30, [#allocation6], 256, 256, 16
    $region9: #{tpu_custom_call.1} parent=1 // pred_fallthru
      _
    // Predicated region
    $region10: #{tpu_custom_call.1} parent=1 // pred_check
      _
    $region11: #{tpu_custom_call.1} parent=1 // pred_check_branch
      %37 = sbr.rel (0) target = $region13
    $region12: #{tpu_custom_call.1} parent=1 // pred_region
      %s39 = ssub.s32 16384, 16384
      %40 = vsyncadd [#allocation6], %s39
      %s41 = sshll.u32 [#allocation7], 4
      %s42 = int_to_ptr.vmem [resolvable:$true] %s41
      %47 = dma.hbm_to_vmem [thread:$0]  %s2, 16384, %s42, [#allocation6], 256, 256, 16
    $region13: #{tpu_custom_call.1} parent=1 // pred_fallthru
      _
    // Predicated region
    $region14: #{tpu_custom_call.1} parent=1 // pred_check
      _
    $region15: #{tpu_custom_call.1} parent=1 // pred_check_branch
      %49 = sbr.rel (0) target = $region17
    $region16: #{tpu_custom_call.1} parent=1 // pred_region
      %s51 = ssub.s32 8192, 8192
      %52 = vsyncadd [#allocation9], %s51
      %s53 = sshll.u32 [#allocation8], 4
      %s54 = int_to_ptr.vmem [resolvable:$true] %s53
      %59 = dma.hbm_to_vmem [thread:$0]  %s3, 8192, %s54, [#allocation9], 128, 128, 8
    $region17: #{tpu_custom_call.1} parent=1 // pred_fallthru
      _
    // Predicated region
    $region18: #{tpu_custom_call.1} parent=1 // pred_check
      _
    $region19: #{tpu_custom_call.1} parent=1 // pred_check_branch
      %61 = sbr.rel (0) target = $region21
    $region20: #{tpu_custom_call.1} parent=1 // pred_region
      %s63 = ssub.s32 512, 512
      %64 = vsyncadd [#allocation9], %s63
      %s66 = sshll.u32 [#allocation10], 4
      %s67 = int_to_ptr.vmem [resolvable:$true] %s66
      %69 = dma.hbm_to_vmem [thread:$0]  %s4, 512, %s67, [#allocation9]
    $region21: #{tpu_custom_call.1} parent=1 // pred_fallthru
      _
    // Predicated region
    $region22: #{tpu_custom_call.1} parent=1 // pred_check
      _
    $region23: #{tpu_custom_call.1} parent=1 // pred_check_branch
      %71 = sbr.rel (0) target = $region25
    $region24: #{tpu_custom_call.1} parent=1 // pred_region
      %72 = dma.done [#allocation3], 1024
    $region25: #{tpu_custom_call.1} parent=1 // pred_fallthru
      _
    // Predicated region
    $region26: #{tpu_custom_call.1} parent=1 // pred_check
      _
    $region27: #{tpu_custom_call.1} parent=1 // pred_check_branch
      %74 = sbr.rel (0) target = $region29
    $region28: #{tpu_custom_call.1} parent=1 // pred_region
      %75 = dma.done [#allocation6], 32768
    $region29: #{tpu_custom_call.1} parent=1 // pred_fallthru
      _
    // Predicated region
    $region30: #{tpu_custom_call.1} parent=1 // pred_check
      _
    $region31: #{tpu_custom_call.1} parent=1 // pred_check_branch
      %77 = sbr.rel (0) target = $region33
    $region32: #{tpu_custom_call.1} parent=1 // pred_region
      %78 = dma.done [#allocation6], 16384
    $region33: #{tpu_custom_call.1} parent=1 // pred_fallthru
      _
    // Predicated region
    $region34: #{tpu_custom_call.1} parent=1 // pred_check
      _
    $region35: #{tpu_custom_call.1} parent=1 // pred_check_branch
      %80 = sbr.rel (0) target = $region37
    $region36: #{tpu_custom_call.1} parent=1 // pred_region
      %81 = dma.done [#allocation9], 8192
    $region37: #{tpu_custom_call.1} parent=1 // pred_fallthru
      _
    // Predicated region
    $region38: #{tpu_custom_call.1} parent=1 // pred_check
      _
    $region39: #{tpu_custom_call.1} parent=1 // pred_check_branch
      %83 = sbr.rel (0) target = $region41
    $region40: #{tpu_custom_call.1} parent=1 // pred_region
      %84 = dma.done [#allocation9], 512
    $region41: #{tpu_custom_call.1} parent=1 // pred_fallthru
      _
    %v85 = vld [vmem:[#allocation2] sm:$0xff]
    %v86 = vld [vmem:[#allocation2 + $0x8] sm:$0xff]
    %v87 = vld [vmem:[#allocation2 + $0x10] sm:$0xff]
    %v88 = vld [vmem:[#allocation2 + $0x18] sm:$0xff]
    %v89 = vld [vmem:[#allocation2 + $0x20] sm:$0xff]
    %v90 = vld [vmem:[#allocation2 + $0x28] sm:$0xff]
    %v91 = vld [vmem:[#allocation2 + $0x30] sm:$0xff]
    %v92 = vld [vmem:[#allocation2 + $0x38] sm:$0xff]
    %v93 = vpack.c.bf16 %v85, %v85
    %v94 = vpack.c.bf16 %v86, %v86
    %v95 = vpack.c.bf16 %v87, %v87
    %v96 = vpack.c.bf16 %v88, %v88
    %v97 = vpack.c.bf16 %v89, %v89
    %v98 = vpack.c.bf16 %v90, %v90
    %v99 = vpack.c.bf16 %v91, %v91
    %v100 = vpack.c.bf16 %v92, %v92
    %v101 = vld [vmem:[#allocation10] sm:$0xff]
    %v102 = vld [vmem:[#allocation10 + $0x8] sm:$0xff]
    %v103 = vld [vmem:[#allocation10 + $0x10] sm:$0xff]
    %v104 = vld [vmem:[#allocation10 + $0x18] sm:$0xff]
    %v105 = vld [vmem:[#allocation5] sm:$0xff]
    %v106 = vld [vmem:[#allocation5 + $0x8] sm:$0xff]
    %v107 = vld [vmem:[#allocation5 + $0x10] sm:$0xff]
    %v108 = vld [vmem:[#allocation5 + $0x18] sm:$0xff]
    %v109 = vld [vmem:[#allocation5 + $0x20] sm:$0xff]
    %v110 = vld [vmem:[#allocation5 + $0x28] sm:$0xff]
    %v111 = vld [vmem:[#allocation5 + $0x30] sm:$0xff]
    %v112 = vld [vmem:[#allocation5 + $0x38] sm:$0xff]
    %v113 = vld [vmem:[#allocation5 + $0x40] sm:$0xff]
    %v114 = vld [vmem:[#allocation5 + $0x48] sm:$0xff]
    %v115 = vld [vmem:[#allocation5 + $0x50] sm:$0xff]
    %v116 = vld [vmem:[#allocation5 + $0x58] sm:$0xff]
    %v117 = vld [vmem:[#allocation5 + $0x60] sm:$0xff]
    %v118 = vld [vmem:[#allocation5 + $0x68] sm:$0xff]
    %v119 = vld [vmem:[#allocation5 + $0x70] sm:$0xff]
    %v120 = vld [vmem:[#allocation5 + $0x78] sm:$0xff]
    %v121 = vld [vmem:[#allocation5 + $0x80] sm:$0xff]
    %v122 = vld [vmem:[#allocation5 + $0x88] sm:$0xff]
    %v123 = vld [vmem:[#allocation5 + $0x90] sm:$0xff]
    %v124 = vld [vmem:[#allocation5 + $0x98] sm:$0xff]
    %v125 = vld [vmem:[#allocation5 + $0xa0] sm:$0xff]
    %v126 = vld [vmem:[#allocation5 + $0xa8] sm:$0xff]
    %v127 = vld [vmem:[#allocation5 + $0xb0] sm:$0xff]
    %v128 = vld [vmem:[#allocation5 + $0xb8] sm:$0xff]
    %v129 = vld [vmem:[#allocation5 + $0xc0] sm:$0xff]
    %v130 = vld [vmem:[#allocation5 + $0xc8] sm:$0xff]
    %v131 = vld [vmem:[#allocation5 + $0xd0] sm:$0xff]
    %v132 = vld [vmem:[#allocation5 + $0xd8] sm:$0xff]
    %v133 = vld [vmem:[#allocation5 + $0xe0] sm:$0xff]
    %v134 = vld [vmem:[#allocation5 + $0xe8] sm:$0xff]
    %v135 = vld [vmem:[#allocation5 + $0xf0] sm:$0xff]
    %v136 = vld [vmem:[#allocation5 + $0xf8] sm:$0xff]
    %v137 = vld [vmem:[#allocation5 + $0x100] sm:$0xff]
    %v138 = vld [vmem:[#allocation5 + $0x108] sm:$0xff]
    %v139 = vld [vmem:[#allocation5 + $0x110] sm:$0xff]
    %v140 = vld [vmem:[#allocation5 + $0x118] sm:$0xff]
    %v141 = vld [vmem:[#allocation5 + $0x120] sm:$0xff]
    %v142 = vld [vmem:[#allocation5 + $0x128] sm:$0xff]
    %v143 = vld [vmem:[#allocation5 + $0x130] sm:$0xff]
    %v144 = vld [vmem:[#allocation5 + $0x138] sm:$0xff]
    %v145 = vld [vmem:[#allocation5 + $0x140] sm:$0xff]
    %v146 = vld [vmem:[#allocation5 + $0x148] sm:$0xff]
    %v147 = vld [vmem:[#allocation5 + $0x150] sm:$0xff]
    %v148 = vld [vmem:[#allocation5 + $0x158] sm:$0xff]
    %v149 = vld [vmem:[#allocation5 + $0x160] sm:$0xff]
    %v150 = vld [vmem:[#allocation5 + $0x168] sm:$0xff]
    %v151 = vld [vmem:[#allocation5 + $0x170] sm:$0xff]
    %v152 = vld [vmem:[#allocation5 + $0x178] sm:$0xff]
    %v153 = vld [vmem:[#allocation5 + $0x180] sm:$0xff]
    %v154 = vld [vmem:[#allocation5 + $0x188] sm:$0xff]
    %v155 = vld [vmem:[#allocation5 + $0x190] sm:$0xff]
    %v156 = vld [vmem:[#allocation5 + $0x198] sm:$0xff]
    %v157 = vld [vmem:[#allocation5 + $0x1a0] sm:$0xff]
    %v158 = vld [vmem:[#allocation5 + $0x1a8] sm:$0xff]
    %v159 = vld [vmem:[#allocation5 + $0x1b0] sm:$0xff]
    %v160 = vld [vmem:[#allocation5 + $0x1b8] sm:$0xff]
    %v161 = vld [vmem:[#allocation5 + $0x1c0] sm:$0xff]
    %v162 = vld [vmem:[#allocation5 + $0x1c8] sm:$0xff]
    %v163 = vld [vmem:[#allocation5 + $0x1d0] sm:$0xff]
    %v164 = vld [vmem:[#allocation5 + $0x1d8] sm:$0xff]
    %v165 = vld [vmem:[#allocation5 + $0x1e0] sm:$0xff]
    %v166 = vld [vmem:[#allocation5 + $0x1e8] sm:$0xff]
    %v167 = vld [vmem:[#allocation5 + $0x1f0] sm:$0xff]
    %v168 = vld [vmem:[#allocation5 + $0x1f8] sm:$0xff]
    %v169 = vld [vmem:[#allocation5 + $0x200] sm:$0xff]
    %v170 = vld [vmem:[#allocation5 + $0x208] sm:$0xff]
    %v171 = vld [vmem:[#allocation5 + $0x210] sm:$0xff]
    %v172 = vld [vmem:[#allocation5 + $0x218] sm:$0xff]
    %v173 = vld [vmem:[#allocation5 + $0x220] sm:$0xff]
    %v174 = vld [vmem:[#allocation5 + $0x228] sm:$0xff]
    %v175 = vld [vmem:[#allocation5 + $0x230] sm:$0xff]
    %v176 = vld [vmem:[#allocation5 + $0x238] sm:$0xff]
    %v177 = vld [vmem:[#allocation5 + $0x240] sm:$0xff]
    %v178 = vld [vmem:[#allocation5 + $0x248] sm:$0xff]
    %v179 = vld [vmem:[#allocation5 + $0x250] sm:$0xff]
    %v180 = vld [vmem:[#allocation5 + $0x258] sm:$0xff]
    %v181 = vld [vmem:[#allocation5 + $0x260] sm:$0xff]
    %v182 = vld [vmem:[#allocation5 + $0x268] sm:$0xff]
    %v183 = vld [vmem:[#allocation5 + $0x270] sm:$0xff]
    %v184 = vld [vmem:[#allocation5 + $0x278] sm:$0xff]
    %v185 = vld [vmem:[#allocation5 + $0x280] sm:$0xff]
    %v186 = vld [vmem:[#allocation5 + $0x288] sm:$0xff]
    %v187 = vld [vmem:[#allocation5 + $0x290] sm:$0xff]
    %v188 = vld [vmem:[#allocation5 + $0x298] sm:$0xff]
    %v189 = vld [vmem:[#allocation5 + $0x2a0] sm:$0xff]
    %v190 = vld [vmem:[#allocation5 + $0x2a8] sm:$0xff]
    %v191 = vld [vmem:[#allocation5 + $0x2b0] sm:$0xff]
    %v192 = vld [vmem:[#allocation5 + $0x2b8] sm:$0xff]
    %v193 = vld [vmem:[#allocation5 + $0x2c0] sm:$0xff]
    %v194 = vld [vmem:[#allocation5 + $0x2c8] sm:$0xff]
    %v195 = vld [vmem:[#allocation5 + $0x2d0] sm:$0xff]
    %v196 = vld [vmem:[#allocation5 + $0x2d8] sm:$0xff]
    %v197 = vld [vmem:[#allocation5 + $0x2e0] sm:$0xff]
    %v198 = vld [vmem:[#allocation5 + $0x2e8] sm:$0xff]
    %v199 = vld [vmem:[#allocation5 + $0x2f0] sm:$0xff]
    %v200 = vld [vmem:[#allocation5 + $0x2f8] sm:$0xff]
    %v201 = vld [vmem:[#allocation5 + $0x300] sm:$0xff]
    %v202 = vld [vmem:[#allocation5 + $0x308] sm:$0xff]
    %v203 = vld [vmem:[#allocation5 + $0x310] sm:$0xff]
    %v204 = vld [vmem:[#allocation5 + $0x318] sm:$0xff]
    %v205 = vld [vmem:[#allocation5 + $0x320] sm:$0xff]
    %v206 = vld [vmem:[#allocation5 + $0x328] sm:$0xff]
    %v207 = vld [vmem:[#allocation5 + $0x330] sm:$0xff]
    %v208 = vld [vmem:[#allocation5 + $0x338] sm:$0xff]
    %v209 = vld [vmem:[#allocation5 + $0x340] sm:$0xff]
    %v210 = vld [vmem:[#allocation5 + $0x348] sm:$0xff]
    %v211 = vld [vmem:[#allocation5 + $0x350] sm:$0xff]
    %v212 = vld [vmem:[#allocation5 + $0x358] sm:$0xff]
    %v213 = vld [vmem:[#allocation5 + $0x360] sm:$0xff]
    %v214 = vld [vmem:[#allocation5 + $0x368] sm:$0xff]
    %v215 = vld [vmem:[#allocation5 + $0x370] sm:$0xff]
    %v216 = vld [vmem:[#allocation5 + $0x378] sm:$0xff]
    %v217 = vld [vmem:[#allocation5 + $0x380] sm:$0xff]
    %v218 = vld [vmem:[#allocation5 + $0x388] sm:$0xff]
    %v219 = vld [vmem:[#allocation5 + $0x390] sm:$0xff]
    %v220 = vld [vmem:[#allocation5 + $0x398] sm:$0xff]
    %v221 = vld [vmem:[#allocation5 + $0x3a0] sm:$0xff]
    %v222 = vld [vmem:[#allocation5 + $0x3a8] sm:$0xff]
    %v223 = vld [vmem:[#allocation5 + $0x3b0] sm:$0xff]
    %v224 = vld [vmem:[#allocation5 + $0x3b8] sm:$0xff]
    %v225 = vld [vmem:[#allocation5 + $0x3c0] sm:$0xff]
    %v226 = vld [vmem:[#allocation5 + $0x3c8] sm:$0xff]
    %v227 = vld [vmem:[#allocation5 + $0x3d0] sm:$0xff]
    %v228 = vld [vmem:[#allocation5 + $0x3d8] sm:$0xff]
    %v229 = vld [vmem:[#allocation5 + $0x3e0] sm:$0xff]
    %v230 = vld [vmem:[#allocation5 + $0x3e8] sm:$0xff]
    %v231 = vld [vmem:[#allocation5 + $0x3f0] sm:$0xff]
    %v232 = vld [vmem:[#allocation5 + $0x3f8] sm:$0xff]
    %v233 = vld [vmem:[#allocation5 + $0x400] sm:$0xff]
    %v234 = vld [vmem:[#allocation5 + $0x408] sm:$0xff]
    %v235 = vld [vmem:[#allocation5 + $0x410] sm:$0xff]
    %v236 = vld [vmem:[#allocation5 + $0x418] sm:$0xff]
    %v237 = vld [vmem:[#allocation5 + $0x420] sm:$0xff]
    %v238 = vld [vmem:[#allocation5 + $0x428] sm:$0xff]
    %v239 = vld [vmem:[#allocation5 + $0x430] sm:$0xff]
    %v240 = vld [vmem:[#allocation5 + $0x438] sm:$0xff]
    %v241 = vld [vmem:[#allocation5 + $0x440] sm:$0xff]
    %v242 = vld [vmem:[#allocation5 + $0x448] sm:$0xff]
    %v243 = vld [vmem:[#allocation5 + $0x450] sm:$0xff]
    %v244 = vld [vmem:[#allocation5 + $0x458] sm:$0xff]
    %v245 = vld [vmem:[#allocation5 + $0x460] sm:$0xff]
    %v246 = vld [vmem:[#allocation5 + $0x468] sm:$0xff]
    %v247 = vld [vmem:[#allocation5 + $0x470] sm:$0xff]
    %v248 = vld [vmem:[#allocation5 + $0x478] sm:$0xff]
    %v249 = vld [vmem:[#allocation5 + $0x480] sm:$0xff]
    %v250 = vld [vmem:[#allocation5 + $0x488] sm:$0xff]
    %v251 = vld [vmem:[#allocation5 + $0x490] sm:$0xff]
    %v252 = vld [vmem:[#allocation5 + $0x498] sm:$0xff]
    %v253 = vld [vmem:[#allocation5 + $0x4a0] sm:$0xff]
    %v254 = vld [vmem:[#allocation5 + $0x4a8] sm:$0xff]
    %v255 = vld [vmem:[#allocation5 + $0x4b0] sm:$0xff]
    %v256 = vld [vmem:[#allocation5 + $0x4b8] sm:$0xff]
    %v257 = vld [vmem:[#allocation5 + $0x4c0] sm:$0xff]
    %v258 = vld [vmem:[#allocation5 + $0x4c8] sm:$0xff]
    %v259 = vld [vmem:[#allocation5 + $0x4d0] sm:$0xff]
    %v260 = vld [vmem:[#allocation5 + $0x4d8] sm:$0xff]
    %v261 = vld [vmem:[#allocation5 + $0x4e0] sm:$0xff]
    %v262 = vld [vmem:[#allocation5 + $0x4e8] sm:$0xff]
    %v263 = vld [vmem:[#allocation5 + $0x4f0] sm:$0xff]
    %v264 = vld [vmem:[#allocation5 + $0x4f8] sm:$0xff]
    %v265 = vld [vmem:[#allocation5 + $0x500] sm:$0xff]
    %v266 = vld [vmem:[#allocation5 + $0x508] sm:$0xff]
    %v267 = vld [vmem:[#allocation5 + $0x510] sm:$0xff]
    %v268 = vld [vmem:[#allocation5 + $0x518] sm:$0xff]
    %v269 = vld [vmem:[#allocation5 + $0x520] sm:$0xff]
    %v270 = vld [vmem:[#allocation5 + $0x528] sm:$0xff]
    %v271 = vld [vmem:[#allocation5 + $0x530] sm:$0xff]
    %v272 = vld [vmem:[#allocation5 + $0x538] sm:$0xff]
    %v273 = vld [vmem:[#allocation5 + $0x540] sm:$0xff]
    %v274 = vld [vmem:[#allocation5 + $0x548] sm:$0xff]
    %v275 = vld [vmem:[#allocation5 + $0x550] sm:$0xff]
    %v276 = vld [vmem:[#allocation5 + $0x558] sm:$0xff]
    %v277 = vld [vmem:[#allocation5 + $0x560] sm:$0xff]
    %v278 = vld [vmem:[#allocation5 + $0x568] sm:$0xff]
    %v279 = vld [vmem:[#allocation5 + $0x570] sm:$0xff]
    %v280 = vld [vmem:[#allocation5 + $0x578] sm:$0xff]
    %v281 = vld [vmem:[#allocation5 + $0x580] sm:$0xff]
    %v282 = vld [vmem:[#allocation5 + $0x588] sm:$0xff]
    %v283 = vld [vmem:[#allocation5 + $0x590] sm:$0xff]
    %v284 = vld [vmem:[#allocation5 + $0x598] sm:$0xff]
    %v285 = vld [vmem:[#allocation5 + $0x5a0] sm:$0xff]
    %v286 = vld [vmem:[#allocation5 + $0x5a8] sm:$0xff]
    %v287 = vld [vmem:[#allocation5 + $0x5b0] sm:$0xff]
    %v288 = vld [vmem:[#allocation5 + $0x5b8] sm:$0xff]
    %v289 = vld [vmem:[#allocation5 + $0x5c0] sm:$0xff]
    %v290 = vld [vmem:[#allocation5 + $0x5c8] sm:$0xff]
    %v291 = vld [vmem:[#allocation5 + $0x5d0] sm:$0xff]
    %v292 = vld [vmem:[#allocation5 + $0x5d8] sm:$0xff]
    %v293 = vld [vmem:[#allocation5 + $0x5e0] sm:$0xff]
    %v294 = vld [vmem:[#allocation5 + $0x5e8] sm:$0xff]
    %v295 = vld [vmem:[#allocation5 + $0x5f0] sm:$0xff]
    %v296 = vld [vmem:[#allocation5 + $0x5f8] sm:$0xff]
    %v297 = vld [vmem:[#allocation5 + $0x600] sm:$0xff]
    %v298 = vld [vmem:[#allocation5 + $0x608] sm:$0xff]
    %v299 = vld [vmem:[#allocation5 + $0x610] sm:$0xff]
    %v300 = vld [vmem:[#allocation5 + $0x618] sm:$0xff]
    %v301 = vld [vmem:[#allocation5 + $0x620] sm:$0xff]
    %v302 = vld [vmem:[#allocation5 + $0x628] sm:$0xff]
    %v303 = vld [vmem:[#allocation5 + $0x630] sm:$0xff]
    %v304 = vld [vmem:[#allocation5 + $0x638] sm:$0xff]
    %v305 = vld [vmem:[#allocation5 + $0x640] sm:$0xff]
    %v306 = vld [vmem:[#allocation5 + $0x648] sm:$0xff]
    %v307 = vld [vmem:[#allocation5 + $0x650] sm:$0xff]
    %v308 = vld [vmem:[#allocation5 + $0x658] sm:$0xff]
    %v309 = vld [vmem:[#allocation5 + $0x660] sm:$0xff]
    %v310 = vld [vmem:[#allocation5 + $0x668] sm:$0xff]
    %v311 = vld [vmem:[#allocation5 + $0x670] sm:$0xff]
    %v312 = vld [vmem:[#allocation5 + $0x678] sm:$0xff]
    %v313 = vld [vmem:[#allocation5 + $0x680] sm:$0xff]
    %v314 = vld [vmem:[#allocation5 + $0x688] sm:$0xff]
    %v315 = vld [vmem:[#allocation5 + $0x690] sm:$0xff]
    %v316 = vld [vmem:[#allocation5 + $0x698] sm:$0xff]
    %v317 = vld [vmem:[#allocation5 + $0x6a0] sm:$0xff]
    %v318 = vld [vmem:[#allocation5 + $0x6a8] sm:$0xff]
    %v319 = vld [vmem:[#allocation5 + $0x6b0] sm:$0xff]
    %v320 = vld [vmem:[#allocation5 + $0x6b8] sm:$0xff]
    %v321 = vld [vmem:[#allocation5 + $0x6c0] sm:$0xff]
    %v322 = vld [vmem:[#allocation5 + $0x6c8] sm:$0xff]
    %v323 = vld [vmem:[#allocation5 + $0x6d0] sm:$0xff]
    %v324 = vld [vmem:[#allocation5 + $0x6d8] sm:$0xff]
    %v325 = vld [vmem:[#allocation5 + $0x6e0] sm:$0xff]
    %v326 = vld [vmem:[#allocation5 + $0x6e8] sm:$0xff]
    %v327 = vld [vmem:[#allocation5 + $0x6f0] sm:$0xff]
    %v328 = vld [vmem:[#allocation5 + $0x6f8] sm:$0xff]
    %v329 = vld [vmem:[#allocation5 + $0x700] sm:$0xff]
    %v330 = vld [vmem:[#allocation5 + $0x708] sm:$0xff]
    %v331 = vld [vmem:[#allocation5 + $0x710] sm:$0xff]
    %v332 = vld [vmem:[#allocation5 + $0x718] sm:$0xff]
    %v333 = vld [vmem:[#allocation5 + $0x720] sm:$0xff]
    %v334 = vld [vmem:[#allocation5 + $0x728] sm:$0xff]
    %v335 = vld [vmem:[#allocation5 + $0x730] sm:$0xff]
    %v336 = vld [vmem:[#allocation5 + $0x738] sm:$0xff]
    %v337 = vld [vmem:[#allocation5 + $0x740] sm:$0xff]
    %v338 = vld [vmem:[#allocation5 + $0x748] sm:$0xff]
    %v339 = vld [vmem:[#allocation5 + $0x750] sm:$0xff]
    %v340 = vld [vmem:[#allocation5 + $0x758] sm:$0xff]
    %v341 = vld [vmem:[#allocation5 + $0x760] sm:$0xff]
    %v342 = vld [vmem:[#allocation5 + $0x768] sm:$0xff]
    %v343 = vld [vmem:[#allocation5 + $0x770] sm:$0xff]
    %v344 = vld [vmem:[#allocation5 + $0x778] sm:$0xff]
    %v345 = vld [vmem:[#allocation5 + $0x780] sm:$0xff]
    %v346 = vld [vmem:[#allocation5 + $0x788] sm:$0xff]
    %v347 = vld [vmem:[#allocation5 + $0x790] sm:$0xff]
    %v348 = vld [vmem:[#allocation5 + $0x798] sm:$0xff]
    %v349 = vld [vmem:[#allocation5 + $0x7a0] sm:$0xff]
    %v350 = vld [vmem:[#allocation5 + $0x7a8] sm:$0xff]
    %v351 = vld [vmem:[#allocation5 + $0x7b0] sm:$0xff]
    %v352 = vld [vmem:[#allocation5 + $0x7b8] sm:$0xff]
    %v353 = vld [vmem:[#allocation5 + $0x7c0] sm:$0xff]
    %v354 = vld [vmem:[#allocation5 + $0x7c8] sm:$0xff]
    %v355 = vld [vmem:[#allocation5 + $0x7d0] sm:$0xff]
    %v356 = vld [vmem:[#allocation5 + $0x7d8] sm:$0xff]
    %v357 = vld [vmem:[#allocation5 + $0x7e0] sm:$0xff]
    %v358 = vld [vmem:[#allocation5 + $0x7e8] sm:$0xff]
    %v359 = vld [vmem:[#allocation5 + $0x7f0] sm:$0xff]
    %v360 = vld [vmem:[#allocation5 + $0x7f8] sm:$0xff]
    %v361 = vlaneseq
    %v362 = vshrl.u32 %v361, 7
    %v363 = vsub.s32 0, %v362
    %v364 = vrot.slane %v101, %v363
    %v365 = vlaneseq
    %v366 = vshrl.u32 %v365, 7
    %v367 = vsub.s32 0, %v366
    %v368 = vrot.slane %v102, %v367
    %v369 = vlaneseq
    %v370 = vshrl.u32 %v369, 7
    %v371 = vsub.s32 0, %v370
    %v372 = vrot.slane %v103, %v371
    %v373 = vlaneseq
    %v374 = vshrl.u32 %v373, 7
    %v375 = vsub.s32 0, %v374
    %v376 = vrot.slane %v104, %v375
    %v633 = vunpack.c.l.b16 %v105
    %v634 = vunpack.c.h.b16 %v105
    %v635 = vunpack.c.l.b16 %v106
    %v636 = vunpack.c.h.b16 %v106
    %v637 = vunpack.c.l.b16 %v107
    %v638 = vunpack.c.h.b16 %v107
    %v639 = vunpack.c.l.b16 %v108
    %v640 = vunpack.c.h.b16 %v108
    %v641 = vunpack.c.l.b16 %v109
    %v642 = vunpack.c.h.b16 %v109
    %v643 = vunpack.c.l.b16 %v110
    %v644 = vunpack.c.h.b16 %v110
    %v645 = vunpack.c.l.b16 %v111
    %v646 = vunpack.c.h.b16 %v111
    %v647 = vunpack.c.l.b16 %v112
    %v648 = vunpack.c.h.b16 %v112
    %v649 = vunpack.c.l.b16 %v113
    %v650 = vunpack.c.h.b16 %v113
    %v651 = vunpack.c.l.b16 %v114
    %v652 = vunpack.c.h.b16 %v114
    %v653 = vunpack.c.l.b16 %v115
    %v654 = vunpack.c.h.b16 %v115
    %v655 = vunpack.c.l.b16 %v116
    %v656 = vunpack.c.h.b16 %v116
    %v657 = vunpack.c.l.b16 %v117
    %v658 = vunpack.c.h.b16 %v117
    %v659 = vunpack.c.l.b16 %v118
    %v660 = vunpack.c.h.b16 %v118
    %v661 = vunpack.c.l.b16 %v119
    %v662 = vunpack.c.h.b16 %v119
    %v663 = vunpack.c.l.b16 %v120
    %v664 = vunpack.c.h.b16 %v120
    %v665 = vunpack.c.l.b16 %v121
    %v666 = vunpack.c.h.b16 %v121
    %v667 = vunpack.c.l.b16 %v122
    %v668 = vunpack.c.h.b16 %v122
    %v669 = vunpack.c.l.b16 %v123
    %v670 = vunpack.c.h.b16 %v123
    %v671 = vunpack.c.l.b16 %v124
    %v672 = vunpack.c.h.b16 %v124
    %v673 = vunpack.c.l.b16 %v125
    %v674 = vunpack.c.h.b16 %v125
    %v675 = vunpack.c.l.b16 %v126
    %v676 = vunpack.c.h.b16 %v126
    %v677 = vunpack.c.l.b16 %v127
    %v678 = vunpack.c.h.b16 %v127
    %v679 = vunpack.c.l.b16 %v128
    %v680 = vunpack.c.h.b16 %v128
    %v681 = vunpack.c.l.b16 %v129
    %v682 = vunpack.c.h.b16 %v129
    %v683 = vunpack.c.l.b16 %v130
    %v684 = vunpack.c.h.b16 %v130
    %v685 = vunpack.c.l.b16 %v131
    %v686 = vunpack.c.h.b16 %v131
    %v687 = vunpack.c.l.b16 %v132
    %v688 = vunpack.c.h.b16 %v132
    %v689 = vunpack.c.l.b16 %v133
    %v690 = vunpack.c.h.b16 %v133
    %v691 = vunpack.c.l.b16 %v134
    %v692 = vunpack.c.h.b16 %v134
    %v693 = vunpack.c.l.b16 %v135
    %v694 = vunpack.c.h.b16 %v135
    %v695 = vunpack.c.l.b16 %v136
    %v696 = vunpack.c.h.b16 %v136
    %v697 = vunpack.c.l.b16 %v137
    %v698 = vunpack.c.h.b16 %v137
    %v699 = vunpack.c.l.b16 %v138
    %v700 = vunpack.c.h.b16 %v138
    %v701 = vunpack.c.l.b16 %v139
    %v702 = vunpack.c.h.b16 %v139
    %v703 = vunpack.c.l.b16 %v140
    %v704 = vunpack.c.h.b16 %v140
    %v705 = vunpack.c.l.b16 %v141
    %v706 = vunpack.c.h.b16 %v141
    %v707 = vunpack.c.l.b16 %v142
    %v708 = vunpack.c.h.b16 %v142
    %v709 = vunpack.c.l.b16 %v143
    %v710 = vunpack.c.h.b16 %v143
    %v711 = vunpack.c.l.b16 %v144
    %v712 = vunpack.c.h.b16 %v144
    %v713 = vunpack.c.l.b16 %v145
    %v714 = vunpack.c.h.b16 %v145
    %v715 = vunpack.c.l.b16 %v146
    %v716 = vunpack.c.h.b16 %v146
    %v717 = vunpack.c.l.b16 %v147
    %v718 = vunpack.c.h.b16 %v147
    %v719 = vunpack.c.l.b16 %v148
    %v720 = vunpack.c.h.b16 %v148
    %v721 = vunpack.c.l.b16 %v149
    %v722 = vunpack.c.h.b16 %v149
    %v723 = vunpack.c.l.b16 %v150
    %v724 = vunpack.c.h.b16 %v150
    %v725 = vunpack.c.l.b16 %v151
    %v726 = vunpack.c.h.b16 %v151
    %v727 = vunpack.c.l.b16 %v152
    %v728 = vunpack.c.h.b16 %v152
    %v729 = vunpack.c.l.b16 %v153
    %v730 = vunpack.c.h.b16 %v153
    %v731 = vunpack.c.l.b16 %v154
    %v732 = vunpack.c.h.b16 %v154
    %v733 = vunpack.c.l.b16 %v155
    %v734 = vunpack.c.h.b16 %v155
    %v735 = vunpack.c.l.b16 %v156
    %v736 = vunpack.c.h.b16 %v156
    %v737 = vunpack.c.l.b16 %v157
    %v738 = vunpack.c.h.b16 %v157
    %v739 = vunpack.c.l.b16 %v158
    %v740 = vunpack.c.h.b16 %v158
    %v741 = vunpack.c.l.b16 %v159
    %v742 = vunpack.c.h.b16 %v159
    %v743 = vunpack.c.l.b16 %v160
    %v744 = vunpack.c.h.b16 %v160
    %v745 = vunpack.c.l.b16 %v161
    %v746 = vunpack.c.h.b16 %v161
    %v747 = vunpack.c.l.b16 %v162
    %v748 = vunpack.c.h.b16 %v162
    %v749 = vunpack.c.l.b16 %v163
    %v750 = vunpack.c.h.b16 %v163
    %v751 = vunpack.c.l.b16 %v164
    %v752 = vunpack.c.h.b16 %v164
    %v753 = vunpack.c.l.b16 %v165
    %v754 = vunpack.c.h.b16 %v165
    %v755 = vunpack.c.l.b16 %v166
    %v756 = vunpack.c.h.b16 %v166
    %v757 = vunpack.c.l.b16 %v167
    %v758 = vunpack.c.h.b16 %v167
    %v759 = vunpack.c.l.b16 %v168
    %v760 = vunpack.c.h.b16 %v168
    %v761 = vunpack.c.l.b16 %v169
    %v762 = vunpack.c.h.b16 %v169
    %v763 = vunpack.c.l.b16 %v170
    %v764 = vunpack.c.h.b16 %v170
    %v765 = vunpack.c.l.b16 %v171
    %v766 = vunpack.c.h.b16 %v171
    %v767 = vunpack.c.l.b16 %v172
    %v768 = vunpack.c.h.b16 %v172
    %v769 = vunpack.c.l.b16 %v173
    %v770 = vunpack.c.h.b16 %v173
    %v771 = vunpack.c.l.b16 %v174
    %v772 = vunpack.c.h.b16 %v174
    %v773 = vunpack.c.l.b16 %v175
    %v774 = vunpack.c.h.b16 %v175
    %v775 = vunpack.c.l.b16 %v176
    %v776 = vunpack.c.h.b16 %v176
    %v777 = vunpack.c.l.b16 %v177
    %v778 = vunpack.c.h.b16 %v177
    %v779 = vunpack.c.l.b16 %v178
    %v780 = vunpack.c.h.b16 %v178
    %v781 = vunpack.c.l.b16 %v179
    %v782 = vunpack.c.h.b16 %v179
    %v783 = vunpack.c.l.b16 %v180
    %v784 = vunpack.c.h.b16 %v180
    %v785 = vunpack.c.l.b16 %v181
    %v786 = vunpack.c.h.b16 %v181
    %v787 = vunpack.c.l.b16 %v182
    %v788 = vunpack.c.h.b16 %v182
    %v789 = vunpack.c.l.b16 %v183
    %v790 = vunpack.c.h.b16 %v183
    %v791 = vunpack.c.l.b16 %v184
    %v792 = vunpack.c.h.b16 %v184
    %v793 = vunpack.c.l.b16 %v185
    %v794 = vunpack.c.h.b16 %v185
    %v795 = vunpack.c.l.b16 %v186
    %v796 = vunpack.c.h.b16 %v186
    %v797 = vunpack.c.l.b16 %v187
    %v798 = vunpack.c.h.b16 %v187
    %v799 = vunpack.c.l.b16 %v188
    %v800 = vunpack.c.h.b16 %v188
    %v801 = vunpack.c.l.b16 %v189
    %v802 = vunpack.c.h.b16 %v189
    %v803 = vunpack.c.l.b16 %v190
    %v804 = vunpack.c.h.b16 %v190
    %v805 = vunpack.c.l.b16 %v191
    %v806 = vunpack.c.h.b16 %v191
    %v807 = vunpack.c.l.b16 %v192
    %v808 = vunpack.c.h.b16 %v192
    %v809 = vunpack.c.l.b16 %v193
    %v810 = vunpack.c.h.b16 %v193
    %v811 = vunpack.c.l.b16 %v194
    %v812 = vunpack.c.h.b16 %v194
    %v813 = vunpack.c.l.b16 %v195
    %v814 = vunpack.c.h.b16 %v195
    %v815 = vunpack.c.l.b16 %v196
    %v816 = vunpack.c.h.b16 %v196
    %v817 = vunpack.c.l.b16 %v197
    %v818 = vunpack.c.h.b16 %v197
    %v819 = vunpack.c.l.b16 %v198
    %v820 = vunpack.c.h.b16 %v198
    %v821 = vunpack.c.l.b16 %v199
    %v822 = vunpack.c.h.b16 %v199
    %v823 = vunpack.c.l.b16 %v200
    %v824 = vunpack.c.h.b16 %v200
    %v825 = vunpack.c.l.b16 %v201
    %v826 = vunpack.c.h.b16 %v201
    %v827 = vunpack.c.l.b16 %v202
    %v828 = vunpack.c.h.b16 %v202
    %v829 = vunpack.c.l.b16 %v203
    %v830 = vunpack.c.h.b16 %v203
    %v831 = vunpack.c.l.b16 %v204
    %v832 = vunpack.c.h.b16 %v204
    %v833 = vunpack.c.l.b16 %v205
    %v834 = vunpack.c.h.b16 %v205
    %v835 = vunpack.c.l.b16 %v206
    %v836 = vunpack.c.h.b16 %v206
    %v837 = vunpack.c.l.b16 %v207
    %v838 = vunpack.c.h.b16 %v207
    %v839 = vunpack.c.l.b16 %v208
    %v840 = vunpack.c.h.b16 %v208
    %v841 = vunpack.c.l.b16 %v209
    %v842 = vunpack.c.h.b16 %v209
    %v843 = vunpack.c.l.b16 %v210
    %v844 = vunpack.c.h.b16 %v210
    %v845 = vunpack.c.l.b16 %v211
    %v846 = vunpack.c.h.b16 %v211
    %v847 = vunpack.c.l.b16 %v212
    %v848 = vunpack.c.h.b16 %v212
    %v849 = vunpack.c.l.b16 %v213
    %v850 = vunpack.c.h.b16 %v213
    %v851 = vunpack.c.l.b16 %v214
    %v852 = vunpack.c.h.b16 %v214
    %v853 = vunpack.c.l.b16 %v215
    %v854 = vunpack.c.h.b16 %v215
    %v855 = vunpack.c.l.b16 %v216
    %v856 = vunpack.c.h.b16 %v216
    %v857 = vunpack.c.l.b16 %v217
    %v858 = vunpack.c.h.b16 %v217
    %v859 = vunpack.c.l.b16 %v218
    %v860 = vunpack.c.h.b16 %v218
    %v861 = vunpack.c.l.b16 %v219
    %v862 = vunpack.c.h.b16 %v219
    %v863 = vunpack.c.l.b16 %v220
    %v864 = vunpack.c.h.b16 %v220
    %v865 = vunpack.c.l.b16 %v221
    %v866 = vunpack.c.h.b16 %v221
    %v867 = vunpack.c.l.b16 %v222
    %v868 = vunpack.c.h.b16 %v222
    %v869 = vunpack.c.l.b16 %v223
    %v870 = vunpack.c.h.b16 %v223
    %v871 = vunpack.c.l.b16 %v224
    %v872 = vunpack.c.h.b16 %v224
    %v873 = vunpack.c.l.b16 %v225
    %v874 = vunpack.c.h.b16 %v225
    %v875 = vunpack.c.l.b16 %v226
    %v876 = vunpack.c.h.b16 %v226
    %v877 = vunpack.c.l.b16 %v227
    %v878 = vunpack.c.h.b16 %v227
    %v879 = vunpack.c.l.b16 %v228
    %v880 = vunpack.c.h.b16 %v228
    %v881 = vunpack.c.l.b16 %v229
    %v882 = vunpack.c.h.b16 %v229
    %v883 = vunpack.c.l.b16 %v230
    %v884 = vunpack.c.h.b16 %v230
    %v885 = vunpack.c.l.b16 %v231
    %v886 = vunpack.c.h.b16 %v231
    %v887 = vunpack.c.l.b16 %v232
    %v888 = vunpack.c.h.b16 %v232
    %v889 = vunpack.c.l.b16 %v233
    %v890 = vunpack.c.h.b16 %v233
    %v891 = vunpack.c.l.b16 %v234
    %v892 = vunpack.c.h.b16 %v234
    %v893 = vunpack.c.l.b16 %v235
    %v894 = vunpack.c.h.b16 %v235
    %v895 = vunpack.c.l.b16 %v236
    %v896 = vunpack.c.h.b16 %v236
    %v897 = vunpack.c.l.b16 %v237
    %v898 = vunpack.c.h.b16 %v237
    %v899 = vunpack.c.l.b16 %v238
    %v900 = vunpack.c.h.b16 %v238
    %v901 = vunpack.c.l.b16 %v239
    %v902 = vunpack.c.h.b16 %v239
    %v903 = vunpack.c.l.b16 %v240
    %v904 = vunpack.c.h.b16 %v240
    %v905 = vunpack.c.l.b16 %v241
    %v906 = vunpack.c.h.b16 %v241
    %v907 = vunpack.c.l.b16 %v242
    %v908 = vunpack.c.h.b16 %v242
    %v909 = vunpack.c.l.b16 %v243
    %v910 = vunpack.c.h.b16 %v243
    %v911 = vunpack.c.l.b16 %v244
    %v912 = vunpack.c.h.b16 %v244
    %v913 = vunpack.c.l.b16 %v245
    %v914 = vunpack.c.h.b16 %v245
    %v915 = vunpack.c.l.b16 %v246
    %v916 = vunpack.c.h.b16 %v246
    %v917 = vunpack.c.l.b16 %v247
    %v918 = vunpack.c.h.b16 %v247
    %v919 = vunpack.c.l.b16 %v248
    %v920 = vunpack.c.h.b16 %v248
    %v921 = vunpack.c.l.b16 %v249
    %v922 = vunpack.c.h.b16 %v249
    %v923 = vunpack.c.l.b16 %v250
    %v924 = vunpack.c.h.b16 %v250
    %v925 = vunpack.c.l.b16 %v251
    %v926 = vunpack.c.h.b16 %v251
    %v927 = vunpack.c.l.b16 %v252
    %v928 = vunpack.c.h.b16 %v252
    %v929 = vunpack.c.l.b16 %v253
    %v930 = vunpack.c.h.b16 %v253
    %v931 = vunpack.c.l.b16 %v254
    %v932 = vunpack.c.h.b16 %v254
    %v933 = vunpack.c.l.b16 %v255
    %v934 = vunpack.c.h.b16 %v255
    %v935 = vunpack.c.l.b16 %v256
    %v936 = vunpack.c.h.b16 %v256
    %v937 = vunpack.c.l.b16 %v257
    %v938 = vunpack.c.h.b16 %v257
    %v939 = vunpack.c.l.b16 %v258
    %v940 = vunpack.c.h.b16 %v258
    %v941 = vunpack.c.l.b16 %v259
    %v942 = vunpack.c.h.b16 %v259
    %v943 = vunpack.c.l.b16 %v260
    %v944 = vunpack.c.h.b16 %v260
    %v945 = vunpack.c.l.b16 %v261
    %v946 = vunpack.c.h.b16 %v261
    %v947 = vunpack.c.l.b16 %v262
    %v948 = vunpack.c.h.b16 %v262
    %v949 = vunpack.c.l.b16 %v263
    %v950 = vunpack.c.h.b16 %v263
    %v951 = vunpack.c.l.b16 %v264
    %v952 = vunpack.c.h.b16 %v264
    %v953 = vunpack.c.l.b16 %v265
    %v954 = vunpack.c.h.b16 %v265
    %v955 = vunpack.c.l.b16 %v266
    %v956 = vunpack.c.h.b16 %v266
    %v957 = vunpack.c.l.b16 %v267
    %v958 = vunpack.c.h.b16 %v267
    %v959 = vunpack.c.l.b16 %v268
    %v960 = vunpack.c.h.b16 %v268
    %v961 = vunpack.c.l.b16 %v269
    %v962 = vunpack.c.h.b16 %v269
    %v963 = vunpack.c.l.b16 %v270
    %v964 = vunpack.c.h.b16 %v270
    %v965 = vunpack.c.l.b16 %v271
    %v966 = vunpack.c.h.b16 %v271
    %v967 = vunpack.c.l.b16 %v272
    %v968 = vunpack.c.h.b16 %v272
    %v969 = vunpack.c.l.b16 %v273
    %v970 = vunpack.c.h.b16 %v273
    %v971 = vunpack.c.l.b16 %v274
    %v972 = vunpack.c.h.b16 %v274
    %v973 = vunpack.c.l.b16 %v275
    %v974 = vunpack.c.h.b16 %v275
    %v975 = vunpack.c.l.b16 %v276
    %v976 = vunpack.c.h.b16 %v276
    %v977 = vunpack.c.l.b16 %v277
    %v978 = vunpack.c.h.b16 %v277
    %v979 = vunpack.c.l.b16 %v278
    %v980 = vunpack.c.h.b16 %v278
    %v981 = vunpack.c.l.b16 %v279
    %v982 = vunpack.c.h.b16 %v279
    %v983 = vunpack.c.l.b16 %v280
    %v984 = vunpack.c.h.b16 %v280
    %v985 = vunpack.c.l.b16 %v281
    %v986 = vunpack.c.h.b16 %v281
    %v987 = vunpack.c.l.b16 %v282
    %v988 = vunpack.c.h.b16 %v282
    %v989 = vunpack.c.l.b16 %v283
    %v990 = vunpack.c.h.b16 %v283
    %v991 = vunpack.c.l.b16 %v284
    %v992 = vunpack.c.h.b16 %v284
    %v993 = vunpack.c.l.b16 %v285
    %v994 = vunpack.c.h.b16 %v285
    %v995 = vunpack.c.l.b16 %v286
    %v996 = vunpack.c.h.b16 %v286
    %v997 = vunpack.c.l.b16 %v287
    %v998 = vunpack.c.h.b16 %v287
    %v999 = vunpack.c.l.b16 %v288
    %v1000 = vunpack.c.h.b16 %v288
    %v1001 = vunpack.c.l.b16 %v289
    %v1002 = vunpack.c.h.b16 %v289
    %v1003 = vunpack.c.l.b16 %v290
    %v1004 = vunpack.c.h.b16 %v290
    %v1005 = vunpack.c.l.b16 %v291
    %v1006 = vunpack.c.h.b16 %v291
    %v1007 = vunpack.c.l.b16 %v292
    %v1008 = vunpack.c.h.b16 %v292
    %v1009 = vunpack.c.l.b16 %v293
    %v1010 = vunpack.c.h.b16 %v293
    %v1011 = vunpack.c.l.b16 %v294
    %v1012 = vunpack.c.h.b16 %v294
    %v1013 = vunpack.c.l.b16 %v295
    %v1014 = vunpack.c.h.b16 %v295
    %v1015 = vunpack.c.l.b16 %v296
    %v1016 = vunpack.c.h.b16 %v296
    %v1017 = vunpack.c.l.b16 %v297
    %v1018 = vunpack.c.h.b16 %v297
    %v1019 = vunpack.c.l.b16 %v298
    %v1020 = vunpack.c.h.b16 %v298
    %v1021 = vunpack.c.l.b16 %v299
    %v1022 = vunpack.c.h.b16 %v299
    %v1023 = vunpack.c.l.b16 %v300
    %v1024 = vunpack.c.h.b16 %v300
    %v1025 = vunpack.c.l.b16 %v301
    %v1026 = vunpack.c.h.b16 %v301
    %v1027 = vunpack.c.l.b16 %v302
    %v1028 = vunpack.c.h.b16 %v302
    %v1029 = vunpack.c.l.b16 %v303
    %v1030 = vunpack.c.h.b16 %v303
    %v1031 = vunpack.c.l.b16 %v304
    %v1032 = vunpack.c.h.b16 %v304
    %v1033 = vunpack.c.l.b16 %v305
    %v1034 = vunpack.c.h.b16 %v305
    %v1035 = vunpack.c.l.b16 %v306
    %v1036 = vunpack.c.h.b16 %v306
    %v1037 = vunpack.c.l.b16 %v307
    %v1038 = vunpack.c.h.b16 %v307
    %v1039 = vunpack.c.l.b16 %v308
    %v1040 = vunpack.c.h.b16 %v308
    %v1041 = vunpack.c.l.b16 %v309
    %v1042 = vunpack.c.h.b16 %v309
    %v1043 = vunpack.c.l.b16 %v310
    %v1044 = vunpack.c.h.b16 %v310
    %v1045 = vunpack.c.l.b16 %v311
    %v1046 = vunpack.c.h.b16 %v311
    %v1047 = vunpack.c.l.b16 %v312
    %v1048 = vunpack.c.h.b16 %v312
    %v1049 = vunpack.c.l.b16 %v313
    %v1050 = vunpack.c.h.b16 %v313
    %v1051 = vunpack.c.l.b16 %v314
    %v1052 = vunpack.c.h.b16 %v314
    %v1053 = vunpack.c.l.b16 %v315
    %v1054 = vunpack.c.h.b16 %v315
    %v1055 = vunpack.c.l.b16 %v316
    %v1056 = vunpack.c.h.b16 %v316
    %v1057 = vunpack.c.l.b16 %v317
    %v1058 = vunpack.c.h.b16 %v317
    %v1059 = vunpack.c.l.b16 %v318
    %v1060 = vunpack.c.h.b16 %v318
    %v1061 = vunpack.c.l.b16 %v319
    %v1062 = vunpack.c.h.b16 %v319
    %v1063 = vunpack.c.l.b16 %v320
    %v1064 = vunpack.c.h.b16 %v320
    %v1065 = vunpack.c.l.b16 %v321
    %v1066 = vunpack.c.h.b16 %v321
    %v1067 = vunpack.c.l.b16 %v322
    %v1068 = vunpack.c.h.b16 %v322
    %v1069 = vunpack.c.l.b16 %v323
    %v1070 = vunpack.c.h.b16 %v323
    %v1071 = vunpack.c.l.b16 %v324
    %v1072 = vunpack.c.h.b16 %v324
    %v1073 = vunpack.c.l.b16 %v325
    %v1074 = vunpack.c.h.b16 %v325
    %v1075 = vunpack.c.l.b16 %v326
    %v1076 = vunpack.c.h.b16 %v326
    %v1077 = vunpack.c.l.b16 %v327
    %v1078 = vunpack.c.h.b16 %v327
    %v1079 = vunpack.c.l.b16 %v328
    %v1080 = vunpack.c.h.b16 %v328
    %v1081 = vunpack.c.l.b16 %v329
    %v1082 = vunpack.c.h.b16 %v329
    %v1083 = vunpack.c.l.b16 %v330
    %v1084 = vunpack.c.h.b16 %v330
    %v1085 = vunpack.c.l.b16 %v331
    %v1086 = vunpack.c.h.b16 %v331
    %v1087 = vunpack.c.l.b16 %v332
    %v1088 = vunpack.c.h.b16 %v332
    %v1089 = vunpack.c.l.b16 %v333
    %v1090 = vunpack.c.h.b16 %v333
    %v1091 = vunpack.c.l.b16 %v334
    %v1092 = vunpack.c.h.b16 %v334
    %v1093 = vunpack.c.l.b16 %v335
    %v1094 = vunpack.c.h.b16 %v335
    %v1095 = vunpack.c.l.b16 %v336
    %v1096 = vunpack.c.h.b16 %v336
    %v1097 = vunpack.c.l.b16 %v337
    %v1098 = vunpack.c.h.b16 %v337
    %v1099 = vunpack.c.l.b16 %v338
    %v1100 = vunpack.c.h.b16 %v338
    %v1101 = vunpack.c.l.b16 %v339
    %v1102 = vunpack.c.h.b16 %v339
    %v1103 = vunpack.c.l.b16 %v340
    %v1104 = vunpack.c.h.b16 %v340
    %v1105 = vunpack.c.l.b16 %v341
    %v1106 = vunpack.c.h.b16 %v341
    %v1107 = vunpack.c.l.b16 %v342
    %v1108 = vunpack.c.h.b16 %v342
    %v1109 = vunpack.c.l.b16 %v343
    %v1110 = vunpack.c.h.b16 %v343
    %v1111 = vunpack.c.l.b16 %v344
    %v1112 = vunpack.c.h.b16 %v344
    %v1113 = vunpack.c.l.b16 %v345
    %v1114 = vunpack.c.h.b16 %v345
    %v1115 = vunpack.c.l.b16 %v346
    %v1116 = vunpack.c.h.b16 %v346
    %v1117 = vunpack.c.l.b16 %v347
    %v1118 = vunpack.c.h.b16 %v347
    %v1119 = vunpack.c.l.b16 %v348
    %v1120 = vunpack.c.h.b16 %v348
    %v1121 = vunpack.c.l.b16 %v349
    %v1122 = vunpack.c.h.b16 %v349
    %v1123 = vunpack.c.l.b16 %v350
    %v1124 = vunpack.c.h.b16 %v350
    %v1125 = vunpack.c.l.b16 %v351
    %v1126 = vunpack.c.h.b16 %v351
    %v1127 = vunpack.c.l.b16 %v352
    %v1128 = vunpack.c.h.b16 %v352
    %v1129 = vunpack.c.l.b16 %v353
    %v1130 = vunpack.c.h.b16 %v353
    %v1131 = vunpack.c.l.b16 %v354
    %v1132 = vunpack.c.h.b16 %v354
    %v1133 = vunpack.c.l.b16 %v355
    %v1134 = vunpack.c.h.b16 %v355
    %v1135 = vunpack.c.l.b16 %v356
    %v1136 = vunpack.c.h.b16 %v356
    %v1137 = vunpack.c.l.b16 %v357
    %v1138 = vunpack.c.h.b16 %v357
    %v1139 = vunpack.c.l.b16 %v358
    %v1140 = vunpack.c.h.b16 %v358
    %v1141 = vunpack.c.l.b16 %v359
    %v1142 = vunpack.c.h.b16 %v359
    %v1143 = vunpack.c.l.b16 %v360
    %v1144 = vunpack.c.h.b16 %v360
    %v1145 = vpack.c.b16 %v637, %v633
    %v1146 = vpack.c.b16 %v638, %v634
    %v1147 = vpack.c.b16 %v639, %v635
    %v1148 = vpack.c.b16 %v640, %v636
    %v1149 = vpack.c.b16 %v645, %v641
    %v1150 = vpack.c.b16 %v646, %v642
    %v1151 = vpack.c.b16 %v647, %v643
    %v1152 = vpack.c.b16 %v648, %v644
    %v1153 = vpack.c.b16 %v653, %v649
    %v1154 = vpack.c.b16 %v654, %v650
    %v1155 = vpack.c.b16 %v655, %v651
    %v1156 = vpack.c.b16 %v656, %v652
    %v1157 = vpack.c.b16 %v661, %v657
    %v1158 = vpack.c.b16 %v662, %v658
    %v1159 = vpack.c.b16 %v663, %v659
    %v1160 = vpack.c.b16 %v664, %v660
    %v1161 = vpack.c.b16 %v669, %v665
    %v1162 = vpack.c.b16 %v670, %v666
    %v1163 = vpack.c.b16 %v671, %v667
    %v1164 = vpack.c.b16 %v672, %v668
    %v1165 = vpack.c.b16 %v677, %v673
    %v1166 = vpack.c.b16 %v678, %v674
    %v1167 = vpack.c.b16 %v679, %v675
    %v1168 = vpack.c.b16 %v680, %v676
    %v1169 = vpack.c.b16 %v685, %v681
    %v1170 = vpack.c.b16 %v686, %v682
    %v1171 = vpack.c.b16 %v687, %v683
    %v1172 = vpack.c.b16 %v688, %v684
    %v1173 = vpack.c.b16 %v693, %v689
    %v1174 = vpack.c.b16 %v694, %v690
    %v1175 = vpack.c.b16 %v695, %v691
    %v1176 = vpack.c.b16 %v696, %v692
    %v1177 = vpack.c.b16 %v701, %v697
    %v1178 = vpack.c.b16 %v702, %v698
    %v1179 = vpack.c.b16 %v703, %v699
    %v1180 = vpack.c.b16 %v704, %v700
    %v1181 = vpack.c.b16 %v709, %v705
    %v1182 = vpack.c.b16 %v710, %v706
    %v1183 = vpack.c.b16 %v711, %v707
    %v1184 = vpack.c.b16 %v712, %v708
    %v1185 = vpack.c.b16 %v717, %v713
    %v1186 = vpack.c.b16 %v718, %v714
    %v1187 = vpack.c.b16 %v719, %v715
    %v1188 = vpack.c.b16 %v720, %v716
    %v1189 = vpack.c.b16 %v725, %v721
    %v1190 = vpack.c.b16 %v726, %v722
    %v1191 = vpack.c.b16 %v727, %v723
    %v1192 = vpack.c.b16 %v728, %v724
    %v1193 = vpack.c.b16 %v733, %v729
    %v1194 = vpack.c.b16 %v734, %v730
    %v1195 = vpack.c.b16 %v735, %v731
    %v1196 = vpack.c.b16 %v736, %v732
    %v1197 = vpack.c.b16 %v741, %v737
    %v1198 = vpack.c.b16 %v742, %v738
    %v1199 = vpack.c.b16 %v743, %v739
    %v1200 = vpack.c.b16 %v744, %v740
    %v1201 = vpack.c.b16 %v749, %v745
    %v1202 = vpack.c.b16 %v750, %v746
    %v1203 = vpack.c.b16 %v751, %v747
    %v1204 = vpack.c.b16 %v752, %v748
    %v1205 = vpack.c.b16 %v757, %v753
    %v1206 = vpack.c.b16 %v758, %v754
    %v1207 = vpack.c.b16 %v759, %v755
    %v1208 = vpack.c.b16 %v760, %v756
    %v1209 = vpack.c.b16 %v765, %v761
    %v1210 = vpack.c.b16 %v766, %v762
    %v1211 = vpack.c.b16 %v767, %v763
    %v1212 = vpack.c.b16 %v768, %v764
    %v1213 = vpack.c.b16 %v773, %v769
    %v1214 = vpack.c.b16 %v774, %v770
    %v1215 = vpack.c.b16 %v775, %v771
    %v1216 = vpack.c.b16 %v776, %v772
    %v1217 = vpack.c.b16 %v781, %v777
    %v1218 = vpack.c.b16 %v782, %v778
    %v1219 = vpack.c.b16 %v783, %v779
    %v1220 = vpack.c.b16 %v784, %v780
    %v1221 = vpack.c.b16 %v789, %v785
    %v1222 = vpack.c.b16 %v790, %v786
    %v1223 = vpack.c.b16 %v791, %v787
    %v1224 = vpack.c.b16 %v792, %v788
    %v1225 = vpack.c.b16 %v797, %v793
    %v1226 = vpack.c.b16 %v798, %v794
    %v1227 = vpack.c.b16 %v799, %v795
    %v1228 = vpack.c.b16 %v800, %v796
    %v1229 = vpack.c.b16 %v805, %v801
    %v1230 = vpack.c.b16 %v806, %v802
    %v1231 = vpack.c.b16 %v807, %v803
    %v1232 = vpack.c.b16 %v808, %v804
    %v1233 = vpack.c.b16 %v813, %v809
    %v1234 = vpack.c.b16 %v814, %v810
    %v1235 = vpack.c.b16 %v815, %v811
    %v1236 = vpack.c.b16 %v816, %v812
    %v1237 = vpack.c.b16 %v821, %v817
    %v1238 = vpack.c.b16 %v822, %v818
    %v1239 = vpack.c.b16 %v823, %v819
    %v1240 = vpack.c.b16 %v824, %v820
    %v1241 = vpack.c.b16 %v829, %v825
    %v1242 = vpack.c.b16 %v830, %v826
    %v1243 = vpack.c.b16 %v831, %v827
    %v1244 = vpack.c.b16 %v832, %v828
    %v1245 = vpack.c.b16 %v837, %v833
    %v1246 = vpack.c.b16 %v838, %v834
    %v1247 = vpack.c.b16 %v839, %v835
    %v1248 = vpack.c.b16 %v840, %v836
    %v1249 = vpack.c.b16 %v845, %v841
    %v1250 = vpack.c.b16 %v846, %v842
    %v1251 = vpack.c.b16 %v847, %v843
    %v1252 = vpack.c.b16 %v848, %v844
    %v1253 = vpack.c.b16 %v853, %v849
    %v1254 = vpack.c.b16 %v854, %v850
    %v1255 = vpack.c.b16 %v855, %v851
    %v1256 = vpack.c.b16 %v856, %v852
    %v1257 = vpack.c.b16 %v861, %v857
    %v1258 = vpack.c.b16 %v862, %v858
    %v1259 = vpack.c.b16 %v863, %v859
    %v1260 = vpack.c.b16 %v864, %v860
    %v1261 = vpack.c.b16 %v869, %v865
    %v1262 = vpack.c.b16 %v870, %v866
    %v1263 = vpack.c.b16 %v871, %v867
    %v1264 = vpack.c.b16 %v872, %v868
    %v1265 = vpack.c.b16 %v877, %v873
    %v1266 = vpack.c.b16 %v878, %v874
    %v1267 = vpack.c.b16 %v879, %v875
    %v1268 = vpack.c.b16 %v880, %v876
    %v1269 = vpack.c.b16 %v885, %v881
    %v1270 = vpack.c.b16 %v886, %v882
    %v1271 = vpack.c.b16 %v887, %v883
    %v1272 = vpack.c.b16 %v888, %v884
    %v1273 = vpack.c.b16 %v893, %v889
    %v1274 = vpack.c.b16 %v894, %v890
    %v1275 = vpack.c.b16 %v895, %v891
    %v1276 = vpack.c.b16 %v896, %v892
    %v1277 = vpack.c.b16 %v901, %v897
    %v1278 = vpack.c.b16 %v902, %v898
    %v1279 = vpack.c.b16 %v903, %v899
    %v1280 = vpack.c.b16 %v904, %v900
    %v1281 = vpack.c.b16 %v909, %v905
    %v1282 = vpack.c.b16 %v910, %v906
    %v1283 = vpack.c.b16 %v911, %v907
    %v1284 = vpack.c.b16 %v912, %v908
    %v1285 = vpack.c.b16 %v917, %v913
    %v1286 = vpack.c.b16 %v918, %v914
    %v1287 = vpack.c.b16 %v919, %v915
    %v1288 = vpack.c.b16 %v920, %v916
    %v1289 = vpack.c.b16 %v925, %v921
    %v1290 = vpack.c.b16 %v926, %v922
    %v1291 = vpack.c.b16 %v927, %v923
    %v1292 = vpack.c.b16 %v928, %v924
    %v1293 = vpack.c.b16 %v933, %v929
    %v1294 = vpack.c.b16 %v934, %v930
    %v1295 = vpack.c.b16 %v935, %v931
    %v1296 = vpack.c.b16 %v936, %v932
    %v1297 = vpack.c.b16 %v941, %v937
    %v1298 = vpack.c.b16 %v942, %v938
    %v1299 = vpack.c.b16 %v943, %v939
    %v1300 = vpack.c.b16 %v944, %v940
    %v1301 = vpack.c.b16 %v949, %v945
    %v1302 = vpack.c.b16 %v950, %v946
    %v1303 = vpack.c.b16 %v951, %v947
    %v1304 = vpack.c.b16 %v952, %v948
    %v1305 = vpack.c.b16 %v957, %v953
    %v1306 = vpack.c.b16 %v958, %v954
    %v1307 = vpack.c.b16 %v959, %v955
    %v1308 = vpack.c.b16 %v960, %v956
    %v1309 = vpack.c.b16 %v965, %v961
    %v1310 = vpack.c.b16 %v966, %v962
    %v1311 = vpack.c.b16 %v967, %v963
    %v1312 = vpack.c.b16 %v968, %v964
    %v1313 = vpack.c.b16 %v973, %v969
    %v1314 = vpack.c.b16 %v974, %v970
    %v1315 = vpack.c.b16 %v975, %v971
    %v1316 = vpack.c.b16 %v976, %v972
    %v1317 = vpack.c.b16 %v981, %v977
    %v1318 = vpack.c.b16 %v982, %v978
    %v1319 = vpack.c.b16 %v983, %v979
    %v1320 = vpack.c.b16 %v984, %v980
    %v1321 = vpack.c.b16 %v989, %v985
    %v1322 = vpack.c.b16 %v990, %v986
    %v1323 = vpack.c.b16 %v991, %v987
    %v1324 = vpack.c.b16 %v992, %v988
    %v1325 = vpack.c.b16 %v997, %v993
    %v1326 = vpack.c.b16 %v998, %v994
    %v1327 = vpack.c.b16 %v999, %v995
    %v1328 = vpack.c.b16 %v1000, %v996
    %v1329 = vpack.c.b16 %v1005, %v1001
    %v1330 = vpack.c.b16 %v1006, %v1002
    %v1331 = vpack.c.b16 %v1007, %v1003
    %v1332 = vpack.c.b16 %v1008, %v1004
    %v1333 = vpack.c.b16 %v1013, %v1009
    %v1334 = vpack.c.b16 %v1014, %v1010
    %v1335 = vpack.c.b16 %v1015, %v1011
    %v1336 = vpack.c.b16 %v1016, %v1012
    %v1337 = vpack.c.b16 %v1021, %v1017
    %v1338 = vpack.c.b16 %v1022, %v1018
    %v1339 = vpack.c.b16 %v1023, %v1019
    %v1340 = vpack.c.b16 %v1024, %v1020
    %v1341 = vpack.c.b16 %v1029, %v1025
    %v1342 = vpack.c.b16 %v1030, %v1026
    %v1343 = vpack.c.b16 %v1031, %v1027
    %v1344 = vpack.c.b16 %v1032, %v1028
    %v1345 = vpack.c.b16 %v1037, %v1033
    %v1346 = vpack.c.b16 %v1038, %v1034
    %v1347 = vpack.c.b16 %v1039, %v1035
    %v1348 = vpack.c.b16 %v1040, %v1036
    %v1349 = vpack.c.b16 %v1045, %v1041
    %v1350 = vpack.c.b16 %v1046, %v1042
    %v1351 = vpack.c.b16 %v1047, %v1043
    %v1352 = vpack.c.b16 %v1048, %v1044
    %v1353 = vpack.c.b16 %v1053, %v1049
    %v1354 = vpack.c.b16 %v1054, %v1050
    %v1355 = vpack.c.b16 %v1055, %v1051
    %v1356 = vpack.c.b16 %v1056, %v1052
    %v1357 = vpack.c.b16 %v1061, %v1057
    %v1358 = vpack.c.b16 %v1062, %v1058
    %v1359 = vpack.c.b16 %v1063, %v1059
    %v1360 = vpack.c.b16 %v1064, %v1060
    %v1361 = vpack.c.b16 %v1069, %v1065
    %v1362 = vpack.c.b16 %v1070, %v1066
    %v1363 = vpack.c.b16 %v1071, %v1067
    %v1364 = vpack.c.b16 %v1072, %v1068
    %v1365 = vpack.c.b16 %v1077, %v1073
    %v1366 = vpack.c.b16 %v1078, %v1074
    %v1367 = vpack.c.b16 %v1079, %v1075
    %v1368 = vpack.c.b16 %v1080, %v1076
    %v1369 = vpack.c.b16 %v1085, %v1081
    %v1370 = vpack.c.b16 %v1086, %v1082
    %v1371 = vpack.c.b16 %v1087, %v1083
    %v1372 = vpack.c.b16 %v1088, %v1084
    %v1373 = vpack.c.b16 %v1093, %v1089
    %v1374 = vpack.c.b16 %v1094, %v1090
    %v1375 = vpack.c.b16 %v1095, %v1091
    %v1376 = vpack.c.b16 %v1096, %v1092
    %v1377 = vpack.c.b16 %v1101, %v1097
    %v1378 = vpack.c.b16 %v1102, %v1098
    %v1379 = vpack.c.b16 %v1103, %v1099
    %v1380 = vpack.c.b16 %v1104, %v1100
    %v1381 = vpack.c.b16 %v1109, %v1105
    %v1382 = vpack.c.b16 %v1110, %v1106
    %v1383 = vpack.c.b16 %v1111, %v1107
    %v1384 = vpack.c.b16 %v1112, %v1108
    %v1385 = vpack.c.b16 %v1117, %v1113
    %v1386 = vpack.c.b16 %v1118, %v1114
    %v1387 = vpack.c.b16 %v1119, %v1115
    %v1388 = vpack.c.b16 %v1120, %v1116
    %v1389 = vpack.c.b16 %v1125, %v1121
    %v1390 = vpack.c.b16 %v1126, %v1122
    %v1391 = vpack.c.b16 %v1127, %v1123
    %v1392 = vpack.c.b16 %v1128, %v1124
    %v1393 = vpack.c.b16 %v1133, %v1129
    %v1394 = vpack.c.b16 %v1134, %v1130
    %v1395 = vpack.c.b16 %v1135, %v1131
    %v1396 = vpack.c.b16 %v1136, %v1132
    %v1397 = vpack.c.b16 %v1141, %v1137
    %v1398 = vpack.c.b16 %v1142, %v1138
    %v1399 = vpack.c.b16 %v1143, %v1139
    %v1400 = vpack.c.b16 %v1144, %v1140
    %1657 = vmatprep.subr.bf16.mxu0 %v1146
    %1658 = vmatpush1.bf16.msra.mxu0 %v1145
    %1659 = vmatprep.subr.bf16.mxu0 %v1150
    %1660 = vmatpush1.bf16.msra.mxu0 %v1149
    %1661 = vmatprep.subr.bf16.mxu0 %v1154
    %1662 = vmatpush1.bf16.msra.mxu0 %v1153
    %1663 = vmatprep.subr.bf16.mxu0 %v1158
    %1664 = vmatpush1.bf16.msra.mxu0 %v1157
    %1665 = vmatprep.subr.bf16.mxu0 %v1162
    %1666 = vmatpush1.bf16.msra.mxu0 %v1161
    %1667 = vmatprep.subr.bf16.mxu0 %v1166
    %1668 = vmatpush1.bf16.msra.mxu0 %v1165
    %1669 = vmatprep.subr.bf16.mxu0 %v1170
    %1670 = vmatpush1.bf16.msra.mxu0 %v1169
    %1671 = vmatprep.subr.bf16.mxu0 %v1174
    %1672 = vmatpush1.bf16.msra.mxu0 %v1173
    %1673 = vmatprep.subr.bf16.mxu0 %v1178
    %1674 = vmatpush1.bf16.msra.mxu0 %v1177
    %1675 = vmatprep.subr.bf16.mxu0 %v1182
    %1676 = vmatpush1.bf16.msra.mxu0 %v1181
    %1677 = vmatprep.subr.bf16.mxu0 %v1186
    %1678 = vmatpush1.bf16.msra.mxu0 %v1185
    %1679 = vmatprep.subr.bf16.mxu0 %v1190
    %1680 = vmatpush1.bf16.msra.mxu0 %v1189
    %1681 = vmatprep.subr.bf16.mxu0 %v1194
    %1682 = vmatpush1.bf16.msra.mxu0 %v1193
    %1683 = vmatprep.subr.bf16.mxu0 %v1198
    %1684 = vmatpush1.bf16.msra.mxu0 %v1197
    %1685 = vmatprep.subr.bf16.mxu0 %v1202
    %1686 = vmatpush1.bf16.msra.mxu0 %v1201
    %1687 = vmatprep.subr.bf16.mxu0 %v1206
    %1688 = vmatpush1.bf16.msra.mxu0 %v1205
    %1689 = vmatprep.mubr.bf16.mxu0 %v94
    %1690 = vmatmul.mubr.bf16.gmra.mrb[0].mxu0 %v93
    %v1691 = vpop.f32.mrb[0].mxu0
    %v1692 = vadd.f32 %v364, %v1691
    %v1693 = vpop.f32.mrb[0].mxu0
    %v1694 = vadd.f32 %v368, %v1693
    %v1695 = vpop.f32.mrb[0].mxu0
    %v1696 = vpop.f32.mrb[0].mxu0
    %1697 = vdwg.mxu0
    %1698 = vmatprep.subr.bf16.mxu0 %v1210
    %1699 = vmatpush1.bf16.msra.mxu0 %v1209
    %1700 = vmatprep.subr.bf16.mxu0 %v1214
    %1701 = vmatpush1.bf16.msra.mxu0 %v1213
    %1702 = vmatprep.subr.bf16.mxu0 %v1218
    %1703 = vmatpush1.bf16.msra.mxu0 %v1217
    %1704 = vmatprep.subr.bf16.mxu0 %v1222
    %1705 = vmatpush1.bf16.msra.mxu0 %v1221
    %1706 = vmatprep.subr.bf16.mxu0 %v1226
    %1707 = vmatpush1.bf16.msra.mxu0 %v1225
    %1708 = vmatprep.subr.bf16.mxu0 %v1230
    %1709 = vmatpush1.bf16.msra.mxu0 %v1229
    %1710 = vmatprep.subr.bf16.mxu0 %v1234
    %1711 = vmatpush1.bf16.msra.mxu0 %v1233
    %1712 = vmatprep.subr.bf16.mxu0 %v1238
    %1713 = vmatpush1.bf16.msra.mxu0 %v1237
    %1714 = vmatprep.subr.bf16.mxu0 %v1242
    %1715 = vmatpush1.bf16.msra.mxu0 %v1241
    %1716 = vmatprep.subr.bf16.mxu0 %v1246
    %1717 = vmatpush1.bf16.msra.mxu0 %v1245
    %1718 = vmatprep.subr.bf16.mxu0 %v1250
    %1719 = vmatpush1.bf16.msra.mxu0 %v1249
    %1720 = vmatprep.subr.bf16.mxu0 %v1254
    %1721 = vmatpush1.bf16.msra.mxu0 %v1253
    %1722 = vmatprep.subr.bf16.mxu0 %v1258
    %1723 = vmatpush1.bf16.msra.mxu0 %v1257
    %1724 = vmatprep.subr.bf16.mxu0 %v1262
    %1725 = vmatpush1.bf16.msra.mxu0 %v1261
    %1726 = vmatprep.subr.bf16.mxu0 %v1266
    %1727 = vmatpush1.bf16.msra.mxu0 %v1265
    %1728 = vmatprep.subr.bf16.mxu0 %v1270
    %1729 = vmatpush1.bf16.msra.mxu0 %v1269
    %1730 = vmatprep.mubr.bf16.mxu0 %v96
    %1731 = vmatmul.mubr.bf16.gmra.mrb[0].mxu0 %v95
    %v1732 = vpop.f32.mrb[0].mxu0
    %v1733 = vadd.f32 %v1692, %v1732
    %v1734 = vpop.f32.mrb[0].mxu0
    %v1735 = vadd.f32 %v1694, %v1734
    %v1736 = vpop.f32.mrb[0].mxu0
    %v1737 = vpop.f32.mrb[0].mxu0
    %1738 = vdwg.mxu0
    %1739 = vmatprep.subr.bf16.mxu0 %v1274
    %1740 = vmatpush1.bf16.msra.mxu0 %v1273
    %1741 = vmatprep.subr.bf16.mxu0 %v1278
    %1742 = vmatpush1.bf16.msra.mxu0 %v1277
    %1743 = vmatprep.subr.bf16.mxu0 %v1282
    %1744 = vmatpush1.bf16.msra.mxu0 %v1281
    %1745 = vmatprep.subr.bf16.mxu0 %v1286
    %1746 = vmatpush1.bf16.msra.mxu0 %v1285
    %1747 = vmatprep.subr.bf16.mxu0 %v1290
    %1748 = vmatpush1.bf16.msra.mxu0 %v1289
    %1749 = vmatprep.subr.bf16.mxu0 %v1294
    %1750 = vmatpush1.bf16.msra.mxu0 %v1293
    %1751 = vmatprep.subr.bf16.mxu0 %v1298
    %1752 = vmatpush1.bf16.msra.mxu0 %v1297
    %1753 = vmatprep.subr.bf16.mxu0 %v1302
    %1754 = vmatpush1.bf16.msra.mxu0 %v1301
    %1755 = vmatprep.subr.bf16.mxu0 %v1306
    %1756 = vmatpush1.bf16.msra.mxu0 %v1305
    %1757 = vmatprep.subr.bf16.mxu0 %v1310
    %1758 = vmatpush1.bf16.msra.mxu0 %v1309
    %1759 = vmatprep.subr.bf16.mxu0 %v1314
    %1760 = vmatpush1.bf16.msra.mxu0 %v1313
    %1761 = vmatprep.subr.bf16.mxu0 %v1318
    %1762 = vmatpush1.bf16.msra.mxu0 %v1317
    %1763 = vmatprep.subr.bf16.mxu0 %v1322
    %1764 = vmatpush1.bf16.msra.mxu0 %v1321
    %1765 = vmatprep.subr.bf16.mxu0 %v1326
    %1766 = vmatpush1.bf16.msra.mxu0 %v1325
    %1767 = vmatprep.subr.bf16.mxu0 %v1330
    %1768 = vmatpush1.bf16.msra.mxu0 %v1329
    %1769 = vmatprep.subr.bf16.mxu0 %v1334
    %1770 = vmatpush1.bf16.msra.mxu0 %v1333
    %1771 = vmatprep.mubr.bf16.mxu0 %v98
    %1772 = vmatmul.mubr.bf16.gmra.mrb[0].mxu0 %v97
    %v1773 = vpop.f32.mrb[0].mxu0
    %v1774 = vadd.f32 %v1733, %v1773
    %v1775 = vpop.f32.mrb[0].mxu0
    %v1776 = vadd.f32 %v1735, %v1775
    %v1777 = vpop.f32.mrb[0].mxu0
    %v1778 = vpop.f32.mrb[0].mxu0
    %1779 = vdwg.mxu0
    %1780 = vmatprep.subr.bf16.mxu0 %v1338
    %1781 = vmatpush1.bf16.msra.mxu0 %v1337
    %1782 = vmatprep.subr.bf16.mxu0 %v1342
    %1783 = vmatpush1.bf16.msra.mxu0 %v1341
    %1784 = vmatprep.subr.bf16.mxu0 %v1346
    %1785 = vmatpush1.bf16.msra.mxu0 %v1345
    %1786 = vmatprep.subr.bf16.mxu0 %v1350
    %1787 = vmatpush1.bf16.msra.mxu0 %v1349
    %1788 = vmatprep.subr.bf16.mxu0 %v1354
    %1789 = vmatpush1.bf16.msra.mxu0 %v1353
    %1790 = vmatprep.subr.bf16.mxu0 %v1358
    %1791 = vmatpush1.bf16.msra.mxu0 %v1357
    %1792 = vmatprep.subr.bf16.mxu0 %v1362
    %1793 = vmatpush1.bf16.msra.mxu0 %v1361
    %1794 = vmatprep.subr.bf16.mxu0 %v1366
    %1795 = vmatpush1.bf16.msra.mxu0 %v1365
    %1796 = vmatprep.subr.bf16.mxu0 %v1370
    %1797 = vmatpush1.bf16.msra.mxu0 %v1369
    %1798 = vmatprep.subr.bf16.mxu0 %v1374
    %1799 = vmatpush1.bf16.msra.mxu0 %v1373
    %1800 = vmatprep.subr.bf16.mxu0 %v1378
    %1801 = vmatpush1.bf16.msra.mxu0 %v1377
    %1802 = vmatprep.subr.bf16.mxu0 %v1382
    %1803 = vmatpush1.bf16.msra.mxu0 %v1381
    %1804 = vmatprep.subr.bf16.mxu0 %v1386
    %1805 = vmatpush1.bf16.msra.mxu0 %v1385
    %1806 = vmatprep.subr.bf16.mxu0 %v1390
    %1807 = vmatpush1.bf16.msra.mxu0 %v1389
    %1808 = vmatprep.subr.bf16.mxu0 %v1394
    %1809 = vmatpush1.bf16.msra.mxu0 %v1393
    %1810 = vmatprep.subr.bf16.mxu0 %v1398
    %1811 = vmatpush1.bf16.msra.mxu0 %v1397
    %1812 = vmatprep.mubr.bf16.mxu0 %v100
    %1813 = vmatmul.mubr.bf16.gmra.mrb[0].mxu0 %v99
    %v1814 = vpop.f32.mrb[0].mxu0
    %v1815 = vadd.f32 %v1774, %v1814
    %v1816 = vpop.f32.mrb[0].mxu0
    %v1817 = vadd.f32 %v1776, %v1816
    %v1818 = vpop.f32.mrb[0].mxu0
    %v1819 = vpop.f32.mrb[0].mxu0
    %1820 = vdwg.mxu0
    %1821 = vmatprep.subr.bf16.mxu0 %v1148
    %1822 = vmatpush1.bf16.msra.mxu0 %v1147
    %1823 = vmatprep.subr.bf16.mxu0 %v1152
    %1824 = vmatpush1.bf16.msra.mxu0 %v1151
    %1825 = vmatprep.subr.bf16.mxu0 %v1156
    %1826 = vmatpush1.bf16.msra.mxu0 %v1155
    %1827 = vmatprep.subr.bf16.mxu0 %v1160
    %1828 = vmatpush1.bf16.msra.mxu0 %v1159
    %1829 = vmatprep.subr.bf16.mxu0 %v1164
    %1830 = vmatpush1.bf16.msra.mxu0 %v1163
    %1831 = vmatprep.subr.bf16.mxu0 %v1168
    %1832 = vmatpush1.bf16.msra.mxu0 %v1167
    %1833 = vmatprep.subr.bf16.mxu0 %v1172
    %1834 = vmatpush1.bf16.msra.mxu0 %v1171
    %1835 = vmatprep.subr.bf16.mxu0 %v1176
    %1836 = vmatpush1.bf16.msra.mxu0 %v1175
    %1837 = vmatprep.subr.bf16.mxu0 %v1180
    %1838 = vmatpush1.bf16.msra.mxu0 %v1179
    %1839 = vmatprep.subr.bf16.mxu0 %v1184
    %1840 = vmatpush1.bf16.msra.mxu0 %v1183
    %1841 = vmatprep.subr.bf16.mxu0 %v1188
    %1842 = vmatpush1.bf16.msra.mxu0 %v1187
    %1843 = vmatprep.subr.bf16.mxu0 %v1192
    %1844 = vmatpush1.bf16.msra.mxu0 %v1191
    %1845 = vmatprep.subr.bf16.mxu0 %v1196
    %1846 = vmatpush1.bf16.msra.mxu0 %v1195
    %1847 = vmatprep.subr.bf16.mxu0 %v1200
    %1848 = vmatpush1.bf16.msra.mxu0 %v1199
    %1849 = vmatprep.subr.bf16.mxu0 %v1204
    %1850 = vmatpush1.bf16.msra.mxu0 %v1203
    %1851 = vmatprep.subr.bf16.mxu0 %v1208
    %1852 = vmatpush1.bf16.msra.mxu0 %v1207
    %1853 = vmatprep.mubr.bf16.mxu0 %v94
    %1854 = vmatmul.mubr.bf16.gmra.mrb[0].mxu0 %v93
    %v1855 = vpop.f32.mrb[0].mxu0
    %v1856 = vadd.f32 %v372, %v1855
    %v1857 = vpop.f32.mrb[0].mxu0
    %v1858 = vadd.f32 %v376, %v1857
    %v1859 = vpop.f32.mrb[0].mxu0
    %v1860 = vpop.f32.mrb[0].mxu0
    %1861 = vdwg.mxu0
    %1862 = vmatprep.subr.bf16.mxu0 %v1212
    %1863 = vmatpush1.bf16.msra.mxu0 %v1211
    %1864 = vmatprep.subr.bf16.mxu0 %v1216
    %1865 = vmatpush1.bf16.msra.mxu0 %v1215
    %1866 = vmatprep.subr.bf16.mxu0 %v1220
    %1867 = vmatpush1.bf16.msra.mxu0 %v1219
    %1868 = vmatprep.subr.bf16.mxu0 %v1224
    %1869 = vmatpush1.bf16.msra.mxu0 %v1223
    %1870 = vmatprep.subr.bf16.mxu0 %v1228
    %1871 = vmatpush1.bf16.msra.mxu0 %v1227
    %1872 = vmatprep.subr.bf16.mxu0 %v1232
    %1873 = vmatpush1.bf16.msra.mxu0 %v1231
    %1874 = vmatprep.subr.bf16.mxu0 %v1236
    %1875 = vmatpush1.bf16.msra.mxu0 %v1235
    %1876 = vmatprep.subr.bf16.mxu0 %v1240
    %1877 = vmatpush1.bf16.msra.mxu0 %v1239
    %1878 = vmatprep.subr.bf16.mxu0 %v1244
    %1879 = vmatpush1.bf16.msra.mxu0 %v1243
    %1880 = vmatprep.subr.bf16.mxu0 %v1248
    %1881 = vmatpush1.bf16.msra.mxu0 %v1247
    %1882 = vmatprep.subr.bf16.mxu0 %v1252
    %1883 = vmatpush1.bf16.msra.mxu0 %v1251
    %1884 = vmatprep.subr.bf16.mxu0 %v1256
    %1885 = vmatpush1.bf16.msra.mxu0 %v1255
    %1886 = vmatprep.subr.bf16.mxu0 %v1260
    %1887 = vmatpush1.bf16.msra.mxu0 %v1259
    %1888 = vmatprep.subr.bf16.mxu0 %v1264
    %1889 = vmatpush1.bf16.msra.mxu0 %v1263
    %1890 = vmatprep.subr.bf16.mxu0 %v1268
    %1891 = vmatpush1.bf16.msra.mxu0 %v1267
    %1892 = vmatprep.subr.bf16.mxu0 %v1272
    %1893 = vmatpush1.bf16.msra.mxu0 %v1271
    %1894 = vmatprep.mubr.bf16.mxu0 %v96
    %1895 = vmatmul.mubr.bf16.gmra.mrb[0].mxu0 %v95
    %v1896 = vpop.f32.mrb[0].mxu0
    %v1897 = vadd.f32 %v1856, %v1896
    %v1898 = vpop.f32.mrb[0].mxu0
    %v1899 = vadd.f32 %v1858, %v1898
    %v1900 = vpop.f32.mrb[0].mxu0
    %v1901 = vpop.f32.mrb[0].mxu0
    %1902 = vdwg.mxu0
    %1903 = vmatprep.subr.bf16.mxu0 %v1276
    %1904 = vmatpush1.bf16.msra.mxu0 %v1275
    %1905 = vmatprep.subr.bf16.mxu0 %v1280
    %1906 = vmatpush1.bf16.msra.mxu0 %v1279
    %1907 = vmatprep.subr.bf16.mxu0 %v1284
    %1908 = vmatpush1.bf16.msra.mxu0 %v1283
    %1909 = vmatprep.subr.bf16.mxu0 %v1288
    %1910 = vmatpush1.bf16.msra.mxu0 %v1287
    %1911 = vmatprep.subr.bf16.mxu0 %v1292
    %1912 = vmatpush1.bf16.msra.mxu0 %v1291
    %1913 = vmatprep.subr.bf16.mxu0 %v1296
    %1914 = vmatpush1.bf16.msra.mxu0 %v1295
    %1915 = vmatprep.subr.bf16.mxu0 %v1300
    %1916 = vmatpush1.bf16.msra.mxu0 %v1299
    %1917 = vmatprep.subr.bf16.mxu0 %v1304
    %1918 = vmatpush1.bf16.msra.mxu0 %v1303
    %1919 = vmatprep.subr.bf16.mxu0 %v1308
    %1920 = vmatpush1.bf16.msra.mxu0 %v1307
    %1921 = vmatprep.subr.bf16.mxu0 %v1312
    %1922 = vmatpush1.bf16.msra.mxu0 %v1311
    %1923 = vmatprep.subr.bf16.mxu0 %v1316
    %1924 = vmatpush1.bf16.msra.mxu0 %v1315
    %1925 = vmatprep.subr.bf16.mxu0 %v1320
    %1926 = vmatpush1.bf16.msra.mxu0 %v1319
    %1927 = vmatprep.subr.bf16.mxu0 %v1324
    %1928 = vmatpush1.bf16.msra.mxu0 %v1323
    %1929 = vmatprep.subr.bf16.mxu0 %v1328
    %1930 = vmatpush1.bf16.msra.mxu0 %v1327
    %1931 = vmatprep.subr.bf16.mxu0 %v1332
    %1932 = vmatpush1.bf16.msra.mxu0 %v1331
    %1933 = vmatprep.subr.bf16.mxu0 %v1336
    %1934 = vmatpush1.bf16.msra.mxu0 %v1335
    %1935 = vmatprep.mubr.bf16.mxu0 %v98
    %1936 = vmatmul.mubr.bf16.gmra.mrb[0].mxu0 %v97
    %v1937 = vpop.f32.mrb[0].mxu0
    %v1938 = vadd.f32 %v1897, %v1937
    %v1939 = vpop.f32.mrb[0].mxu0
    %v1940 = vadd.f32 %v1899, %v1939
    %v1941 = vpop.f32.mrb[0].mxu0
    %v1942 = vpop.f32.mrb[0].mxu0
    %1943 = vdwg.mxu0
    %1944 = vmatprep.subr.bf16.mxu0 %v1340
    %1945 = vmatpush1.bf16.msra.mxu0 %v1339
    %1946 = vmatprep.subr.bf16.mxu0 %v1344
    %1947 = vmatpush1.bf16.msra.mxu0 %v1343
    %1948 = vmatprep.subr.bf16.mxu0 %v1348
    %1949 = vmatpush1.bf16.msra.mxu0 %v1347
    %1950 = vmatprep.subr.bf16.mxu0 %v1352
    %1951 = vmatpush1.bf16.msra.mxu0 %v1351
    %1952 = vmatprep.subr.bf16.mxu0 %v1356
    %1953 = vmatpush1.bf16.msra.mxu0 %v1355
    %1954 = vmatprep.subr.bf16.mxu0 %v1360
    %1955 = vmatpush1.bf16.msra.mxu0 %v1359
    %1956 = vmatprep.subr.bf16.mxu0 %v1364
    %1957 = vmatpush1.bf16.msra.mxu0 %v1363
    %1958 = vmatprep.subr.bf16.mxu0 %v1368
    %1959 = vmatpush1.bf16.msra.mxu0 %v1367
    %1960 = vmatprep.subr.bf16.mxu0 %v1372
    %1961 = vmatpush1.bf16.msra.mxu0 %v1371
    %1962 = vmatprep.subr.bf16.mxu0 %v1376
    %1963 = vmatpush1.bf16.msra.mxu0 %v1375
    %1964 = vmatprep.subr.bf16.mxu0 %v1380
    %1965 = vmatpush1.bf16.msra.mxu0 %v1379
    %1966 = vmatprep.subr.bf16.mxu0 %v1384
    %1967 = vmatpush1.bf16.msra.mxu0 %v1383
    %1968 = vmatprep.subr.bf16.mxu0 %v1388
    %1969 = vmatpush1.bf16.msra.mxu0 %v1387
    %1970 = vmatprep.subr.bf16.mxu0 %v1392
    %1971 = vmatpush1.bf16.msra.mxu0 %v1391
    %1972 = vmatprep.subr.bf16.mxu0 %v1396
    %1973 = vmatpush1.bf16.msra.mxu0 %v1395
    %1974 = vmatprep.subr.bf16.mxu0 %v1400
    %1975 = vmatpush1.bf16.msra.mxu0 %v1399
    %1976 = vmatprep.mubr.bf16.mxu0 %v100
    %1977 = vmatmul.mubr.bf16.gmra.mrb[0].mxu0 %v99
    %v1978 = vpop.f32.mrb[0].mxu0
    %v1979 = vadd.f32 %v1938, %v1978
    %v1980 = vpop.f32.mrb[0].mxu0
    %v1981 = vadd.f32 %v1940, %v1980
    %v1982 = vpop.f32.mrb[0].mxu0
    %v1983 = vpop.f32.mrb[0].mxu0
    %1984 = vdwg.mxu0
    %v1985 = vadd.f32 %v1815, %v1817
    %v1986 = vadd.f32 %v1985, %v1979
    %v1987 = vadd.f32 %v1986, %v1981
    %1988 = vadd.xlane.f32.xlu0 %v1987
    %v1989 = vpop.xlane.xlu0 %1988
    %v1990 = vrcp.pop 512.0
    %v1991 = vmul.f32 %v1989, %v1990
    %v1992 = vsub.f32 %v1815, %v1991
    %v1993 = vsub.f32 %v1817, %v1991
    %v1994 = vsub.f32 %v1979, %v1991
    %v1995 = vsub.f32 %v1981, %v1991
    %v1996 = vmul.f32 %v1992, %v1992
    %v1997 = vmul.f32 %v1993, %v1993
    %v1998 = vmul.f32 %v1994, %v1994
    %v1999 = vmul.f32 %v1995, %v1995
    %v2000 = vadd.f32 %v1996, %v1997
    %v2001 = vadd.f32 %v2000, %v1998
    %v2002 = vadd.f32 %v2001, %v1999
    %2003 = vadd.xlane.f32.xlu0 %v2002
    %v2004 = vpop.xlane.xlu0 %2003
    %v2005 = vmul.f32 %v2004, %v1990
    %v2006 = vadd.f32 %v2005, 1e-05
    %v2007 = vrsqrt.pop %v2006
    %v2008 = vmul.f32 %v1992, %v2007
    %v2009 = vmul.f32 %v1993, %v2007
    %v2010 = vmul.f32 %v1994, %v2007
    %v2011 = vmul.f32 %v1995, %v2007
    %v2012 = vlaneseq
    %v2013 = vshrl.u32 %v2012, 7
    %v2014 = vsub.s32 1, %v2013
    %v2015 = vrot.slane %v101, %v2014
    %v2016 = vlaneseq
    %v2017 = vshrl.u32 %v2016, 7
    %v2018 = vsub.s32 1, %v2017
    %v2019 = vrot.slane %v102, %v2018
    %v2020 = vlaneseq
    %v2021 = vshrl.u32 %v2020, 7
    %v2022 = vsub.s32 1, %v2021
    %v2023 = vrot.slane %v103, %v2022
    %v2024 = vlaneseq
    %v2025 = vshrl.u32 %v2024, 7
    %v2026 = vsub.s32 1, %v2025
    %v2027 = vrot.slane %v104, %v2026
    %v2028 = vmul.f32 %v2008, %v2015
    %v2029 = vmul.f32 %v2009, %v2019
    %v2030 = vmul.f32 %v2010, %v2023
    %v2031 = vmul.f32 %v2011, %v2027
    %v2032 = vlaneseq
    %v2033 = vshrl.u32 %v2032, 7
    %v2034 = vsub.s32 2, %v2033
    %v2035 = vrot.slane %v101, %v2034
    %v2036 = vlaneseq
    %v2037 = vshrl.u32 %v2036, 7
    %v2038 = vsub.s32 2, %v2037
    %v2039 = vrot.slane %v102, %v2038
    %v2040 = vlaneseq
    %v2041 = vshrl.u32 %v2040, 7
    %v2042 = vsub.s32 2, %v2041
    %v2043 = vrot.slane %v103, %v2042
    %v2044 = vlaneseq
    %v2045 = vshrl.u32 %v2044, 7
    %v2046 = vsub.s32 2, %v2045
    %v2047 = vrot.slane %v104, %v2046
    %v2048 = vadd.f32 %v2028, %v2035
    %v2049 = vadd.f32 %v2029, %v2039
    %v2050 = vadd.f32 %v2030, %v2043
    %v2051 = vadd.f32 %v2031, %v2047
    %v2052 = vxor.u32 %v2048, 2147483648
    %v2053 = vxor.u32 %v2049, 2147483648
    %v2054 = vxor.u32 %v2050, 2147483648
    %v2055 = vxor.u32 %v2051, 2147483648
    %v2056 = vmul.f32 %v2052, 1.442695
    %v2057 = vpow.pop %v2056
    %v2058 = vmul.f32 %v2053, 1.442695
    %v2059 = vpow.pop %v2058
    %v2060 = vmul.f32 %v2054, 1.442695
    %v2061 = vpow.pop %v2060
    %v2062 = vmul.f32 %v2055, 1.442695
    %v2063 = vpow.pop %v2062
    %v2064 = vadd.f32 %v2057, 1.0
    %v2065 = vadd.f32 %v2059, 1.0
    %v2066 = vadd.f32 %v2061, 1.0
    %v2067 = vadd.f32 %v2063, 1.0
    %v2068 = vrcp.pop %v2064
    %v2069 = vmul.f32 1.0, %v2068
    %v2070 = vrcp.pop %v2065
    %v2071 = vmul.f32 1.0, %v2070
    %v2072 = vrcp.pop %v2066
    %v2073 = vmul.f32 1.0, %v2072
    %v2074 = vrcp.pop %v2067
    %v2075 = vmul.f32 1.0, %v2074
    %v2076 = vmul.f32 %v2048, %v2069
    %v2077 = vmul.f32 %v2049, %v2071
    %v2078 = vmul.f32 %v2050, %v2073
    %v2079 = vmul.f32 %v2051, %v2075
    %v2080 = vpack.c.bf16 %v2076, %v2076
    %v2081 = vpack.c.bf16 %v2077, %v2077
    %v2082 = vpack.c.bf16 %v2078, %v2078
    %v2083 = vpack.c.bf16 %v2079, %v2079
    %v2084 = vld [vmem:[#allocation7] sm:$0xff]
    %v2085 = vld [vmem:[#allocation7 + $0x8] sm:$0xff]
    %v2086 = vld [vmem:[#allocation7 + $0x10] sm:$0xff]
    %v2087 = vld [vmem:[#allocation7 + $0x18] sm:$0xff]
    %v2088 = vld [vmem:[#allocation7 + $0x20] sm:$0xff]
    %v2089 = vld [vmem:[#allocation7 + $0x28] sm:$0xff]
    %v2090 = vld [vmem:[#allocation7 + $0x30] sm:$0xff]
    %v2091 = vld [vmem:[#allocation7 + $0x38] sm:$0xff]
    %v2092 = vld [vmem:[#allocation7 + $0x40] sm:$0xff]
    %v2093 = vld [vmem:[#allocation7 + $0x48] sm:$0xff]
    %v2094 = vld [vmem:[#allocation7 + $0x50] sm:$0xff]
    %v2095 = vld [vmem:[#allocation7 + $0x58] sm:$0xff]
    %v2096 = vld [vmem:[#allocation7 + $0x60] sm:$0xff]
    %v2097 = vld [vmem:[#allocation7 + $0x68] sm:$0xff]
    %v2098 = vld [vmem:[#allocation7 + $0x70] sm:$0xff]
    %v2099 = vld [vmem:[#allocation7 + $0x78] sm:$0xff]
    %v2100 = vld [vmem:[#allocation7 + $0x80] sm:$0xff]
    %v2101 = vld [vmem:[#allocation7 + $0x88] sm:$0xff]
    %v2102 = vld [vmem:[#allocation7 + $0x90] sm:$0xff]
    %v2103 = vld [vmem:[#allocation7 + $0x98] sm:$0xff]
    %v2104 = vld [vmem:[#allocation7 + $0xa0] sm:$0xff]
    %v2105 = vld [vmem:[#allocation7 + $0xa8] sm:$0xff]
    %v2106 = vld [vmem:[#allocation7 + $0xb0] sm:$0xff]
    %v2107 = vld [vmem:[#allocation7 + $0xb8] sm:$0xff]
    %v2108 = vld [vmem:[#allocation7 + $0xc0] sm:$0xff]
    %v2109 = vld [vmem:[#allocation7 + $0xc8] sm:$0xff]
    %v2110 = vld [vmem:[#allocation7 + $0xd0] sm:$0xff]
    %v2111 = vld [vmem:[#allocation7 + $0xd8] sm:$0xff]
    %v2112 = vld [vmem:[#allocation7 + $0xe0] sm:$0xff]
    %v2113 = vld [vmem:[#allocation7 + $0xe8] sm:$0xff]
    %v2114 = vld [vmem:[#allocation7 + $0xf0] sm:$0xff]
    %v2115 = vld [vmem:[#allocation7 + $0xf8] sm:$0xff]
    %v2116 = vld [vmem:[#allocation7 + $0x100] sm:$0xff]
    %v2117 = vld [vmem:[#allocation7 + $0x108] sm:$0xff]
    %v2118 = vld [vmem:[#allocation7 + $0x110] sm:$0xff]
    %v2119 = vld [vmem:[#allocation7 + $0x118] sm:$0xff]
    %v2120 = vld [vmem:[#allocation7 + $0x120] sm:$0xff]
    %v2121 = vld [vmem:[#allocation7 + $0x128] sm:$0xff]
    %v2122 = vld [vmem:[#allocation7 + $0x130] sm:$0xff]
    %v2123 = vld [vmem:[#allocation7 + $0x138] sm:$0xff]
    %v2124 = vld [vmem:[#allocation7 + $0x140] sm:$0xff]
    %v2125 = vld [vmem:[#allocation7 + $0x148] sm:$0xff]
    %v2126 = vld [vmem:[#allocation7 + $0x150] sm:$0xff]
    %v2127 = vld [vmem:[#allocation7 + $0x158] sm:$0xff]
    %v2128 = vld [vmem:[#allocation7 + $0x160] sm:$0xff]
    %v2129 = vld [vmem:[#allocation7 + $0x168] sm:$0xff]
    %v2130 = vld [vmem:[#allocation7 + $0x170] sm:$0xff]
    %v2131 = vld [vmem:[#allocation7 + $0x178] sm:$0xff]
    %v2132 = vld [vmem:[#allocation7 + $0x180] sm:$0xff]
    %v2133 = vld [vmem:[#allocation7 + $0x188] sm:$0xff]
    %v2134 = vld [vmem:[#allocation7 + $0x190] sm:$0xff]
    %v2135 = vld [vmem:[#allocation7 + $0x198] sm:$0xff]
    %v2136 = vld [vmem:[#allocation7 + $0x1a0] sm:$0xff]
    %v2137 = vld [vmem:[#allocation7 + $0x1a8] sm:$0xff]
    %v2138 = vld [vmem:[#allocation7 + $0x1b0] sm:$0xff]
    %v2139 = vld [vmem:[#allocation7 + $0x1b8] sm:$0xff]
    %v2140 = vld [vmem:[#allocation7 + $0x1c0] sm:$0xff]
    %v2141 = vld [vmem:[#allocation7 + $0x1c8] sm:$0xff]
    %v2142 = vld [vmem:[#allocation7 + $0x1d0] sm:$0xff]
    %v2143 = vld [vmem:[#allocation7 + $0x1d8] sm:$0xff]
    %v2144 = vld [vmem:[#allocation7 + $0x1e0] sm:$0xff]
    %v2145 = vld [vmem:[#allocation7 + $0x1e8] sm:$0xff]
    %v2146 = vld [vmem:[#allocation7 + $0x1f0] sm:$0xff]
    %v2147 = vld [vmem:[#allocation7 + $0x1f8] sm:$0xff]
    %v2148 = vld [vmem:[#allocation7 + $0x200] sm:$0xff]
    %v2149 = vld [vmem:[#allocation7 + $0x208] sm:$0xff]
    %v2150 = vld [vmem:[#allocation7 + $0x210] sm:$0xff]
    %v2151 = vld [vmem:[#allocation7 + $0x218] sm:$0xff]
    %v2152 = vld [vmem:[#allocation7 + $0x220] sm:$0xff]
    %v2153 = vld [vmem:[#allocation7 + $0x228] sm:$0xff]
    %v2154 = vld [vmem:[#allocation7 + $0x230] sm:$0xff]
    %v2155 = vld [vmem:[#allocation7 + $0x238] sm:$0xff]
    %v2156 = vld [vmem:[#allocation7 + $0x240] sm:$0xff]
    %v2157 = vld [vmem:[#allocation7 + $0x248] sm:$0xff]
    %v2158 = vld [vmem:[#allocation7 + $0x250] sm:$0xff]
    %v2159 = vld [vmem:[#allocation7 + $0x258] sm:$0xff]
    %v2160 = vld [vmem:[#allocation7 + $0x260] sm:$0xff]
    %v2161 = vld [vmem:[#allocation7 + $0x268] sm:$0xff]
    %v2162 = vld [vmem:[#allocation7 + $0x270] sm:$0xff]
    %v2163 = vld [vmem:[#allocation7 + $0x278] sm:$0xff]
    %v2164 = vld [vmem:[#allocation7 + $0x280] sm:$0xff]
    %v2165 = vld [vmem:[#allocation7 + $0x288] sm:$0xff]
    %v2166 = vld [vmem:[#allocation7 + $0x290] sm:$0xff]
    %v2167 = vld [vmem:[#allocation7 + $0x298] sm:$0xff]
    %v2168 = vld [vmem:[#allocation7 + $0x2a0] sm:$0xff]
    %v2169 = vld [vmem:[#allocation7 + $0x2a8] sm:$0xff]
    %v2170 = vld [vmem:[#allocation7 + $0x2b0] sm:$0xff]
    %v2171 = vld [vmem:[#allocation7 + $0x2b8] sm:$0xff]
    %v2172 = vld [vmem:[#allocation7 + $0x2c0] sm:$0xff]
    %v2173 = vld [vmem:[#allocation7 + $0x2c8] sm:$0xff]
    %v2174 = vld [vmem:[#allocation7 + $0x2d0] sm:$0xff]
    %v2175 = vld [vmem:[#allocation7 + $0x2d8] sm:$0xff]
    %v2176 = vld [vmem:[#allocation7 + $0x2e0] sm:$0xff]
    %v2177 = vld [vmem:[#allocation7 + $0x2e8] sm:$0xff]
    %v2178 = vld [vmem:[#allocation7 + $0x2f0] sm:$0xff]
    %v2179 = vld [vmem:[#allocation7 + $0x2f8] sm:$0xff]
    %v2180 = vld [vmem:[#allocation7 + $0x300] sm:$0xff]
    %v2181 = vld [vmem:[#allocation7 + $0x308] sm:$0xff]
    %v2182 = vld [vmem:[#allocation7 + $0x310] sm:$0xff]
    %v2183 = vld [vmem:[#allocation7 + $0x318] sm:$0xff]
    %v2184 = vld [vmem:[#allocation7 + $0x320] sm:$0xff]
    %v2185 = vld [vmem:[#allocation7 + $0x328] sm:$0xff]
    %v2186 = vld [vmem:[#allocation7 + $0x330] sm:$0xff]
    %v2187 = vld [vmem:[#allocation7 + $0x338] sm:$0xff]
    %v2188 = vld [vmem:[#allocation7 + $0x340] sm:$0xff]
    %v2189 = vld [vmem:[#allocation7 + $0x348] sm:$0xff]
    %v2190 = vld [vmem:[#allocation7 + $0x350] sm:$0xff]
    %v2191 = vld [vmem:[#allocation7 + $0x358] sm:$0xff]
    %v2192 = vld [vmem:[#allocation7 + $0x360] sm:$0xff]
    %v2193 = vld [vmem:[#allocation7 + $0x368] sm:$0xff]
    %v2194 = vld [vmem:[#allocation7 + $0x370] sm:$0xff]
    %v2195 = vld [vmem:[#allocation7 + $0x378] sm:$0xff]
    %v2196 = vld [vmem:[#allocation7 + $0x380] sm:$0xff]
    %v2197 = vld [vmem:[#allocation7 + $0x388] sm:$0xff]
    %v2198 = vld [vmem:[#allocation7 + $0x390] sm:$0xff]
    %v2199 = vld [vmem:[#allocation7 + $0x398] sm:$0xff]
    %v2200 = vld [vmem:[#allocation7 + $0x3a0] sm:$0xff]
    %v2201 = vld [vmem:[#allocation7 + $0x3a8] sm:$0xff]
    %v2202 = vld [vmem:[#allocation7 + $0x3b0] sm:$0xff]
    %v2203 = vld [vmem:[#allocation7 + $0x3b8] sm:$0xff]
    %v2204 = vld [vmem:[#allocation7 + $0x3c0] sm:$0xff]
    %v2205 = vld [vmem:[#allocation7 + $0x3c8] sm:$0xff]
    %v2206 = vld [vmem:[#allocation7 + $0x3d0] sm:$0xff]
    %v2207 = vld [vmem:[#allocation7 + $0x3d8] sm:$0xff]
    %v2208 = vld [vmem:[#allocation7 + $0x3e0] sm:$0xff]
    %v2209 = vld [vmem:[#allocation7 + $0x3e8] sm:$0xff]
    %v2210 = vld [vmem:[#allocation7 + $0x3f0] sm:$0xff]
    %v2211 = vld [vmem:[#allocation7 + $0x3f8] sm:$0xff]
    %v2212 = vlaneseq
    %v2213 = vshrl.u32 %v2212, 7
    %v2214 = vsub.s32 3, %v2213
    %v2215 = vrot.slane %v101, %v2214
    %v2216 = vlaneseq
    %v2217 = vshrl.u32 %v2216, 7
    %v2218 = vsub.s32 3, %v2217
    %v2219 = vrot.slane %v102, %v2218
    %v2220 = vlaneseq
    %v2221 = vshrl.u32 %v2220, 7
    %v2222 = vsub.s32 3, %v2221
    %v2223 = vrot.slane %v103, %v2222
    %v2224 = vlaneseq
    %v2225 = vshrl.u32 %v2224, 7
    %v2226 = vsub.s32 3, %v2225
    %v2227 = vrot.slane %v104, %v2226
    %v2356 = vunpack.c.l.b16 %v2084
    %v2357 = vunpack.c.h.b16 %v2084
    %v2358 = vunpack.c.l.b16 %v2085
    %v2359 = vunpack.c.h.b16 %v2085
    %v2360 = vunpack.c.l.b16 %v2086
    %v2361 = vunpack.c.h.b16 %v2086
    %v2362 = vunpack.c.l.b16 %v2087
    %v2363 = vunpack.c.h.b16 %v2087
    %v2364 = vunpack.c.l.b16 %v2088
    %v2365 = vunpack.c.h.b16 %v2088
    %v2366 = vunpack.c.l.b16 %v2089
    %v2367 = vunpack.c.h.b16 %v2089
    %v2368 = vunpack.c.l.b16 %v2090
    %v2369 = vunpack.c.h.b16 %v2090
    %v2370 = vunpack.c.l.b16 %v2091
    %v2371 = vunpack.c.h.b16 %v2091
    %v2372 = vunpack.c.l.b16 %v2092
    %v2373 = vunpack.c.h.b16 %v2092
    %v2374 = vunpack.c.l.b16 %v2093
    %v2375 = vunpack.c.h.b16 %v2093
    %v2376 = vunpack.c.l.b16 %v2094
    %v2377 = vunpack.c.h.b16 %v2094
    %v2378 = vunpack.c.l.b16 %v2095
    %v2379 = vunpack.c.h.b16 %v2095
    %v2380 = vunpack.c.l.b16 %v2096
    %v2381 = vunpack.c.h.b16 %v2096
    %v2382 = vunpack.c.l.b16 %v2097
    %v2383 = vunpack.c.h.b16 %v2097
    %v2384 = vunpack.c.l.b16 %v2098
    %v2385 = vunpack.c.h.b16 %v2098
    %v2386 = vunpack.c.l.b16 %v2099
    %v2387 = vunpack.c.h.b16 %v2099
    %v2388 = vunpack.c.l.b16 %v2100
    %v2389 = vunpack.c.h.b16 %v2100
    %v2390 = vunpack.c.l.b16 %v2101
    %v2391 = vunpack.c.h.b16 %v2101
    %v2392 = vunpack.c.l.b16 %v2102
    %v2393 = vunpack.c.h.b16 %v2102
    %v2394 = vunpack.c.l.b16 %v2103
    %v2395 = vunpack.c.h.b16 %v2103
    %v2396 = vunpack.c.l.b16 %v2104
    %v2397 = vunpack.c.h.b16 %v2104
    %v2398 = vunpack.c.l.b16 %v2105
    %v2399 = vunpack.c.h.b16 %v2105
    %v2400 = vunpack.c.l.b16 %v2106
    %v2401 = vunpack.c.h.b16 %v2106
    %v2402 = vunpack.c.l.b16 %v2107
    %v2403 = vunpack.c.h.b16 %v2107
    %v2404 = vunpack.c.l.b16 %v2108
    %v2405 = vunpack.c.h.b16 %v2108
    %v2406 = vunpack.c.l.b16 %v2109
    %v2407 = vunpack.c.h.b16 %v2109
    %v2408 = vunpack.c.l.b16 %v2110
    %v2409 = vunpack.c.h.b16 %v2110
    %v2410 = vunpack.c.l.b16 %v2111
    %v2411 = vunpack.c.h.b16 %v2111
    %v2412 = vunpack.c.l.b16 %v2112
    %v2413 = vunpack.c.h.b16 %v2112
    %v2414 = vunpack.c.l.b16 %v2113
    %v2415 = vunpack.c.h.b16 %v2113
    %v2416 = vunpack.c.l.b16 %v2114
    %v2417 = vunpack.c.h.b16 %v2114
    %v2418 = vunpack.c.l.b16 %v2115
    %v2419 = vunpack.c.h.b16 %v2115
    %v2420 = vunpack.c.l.b16 %v2116
    %v2421 = vunpack.c.h.b16 %v2116
    %v2422 = vunpack.c.l.b16 %v2117
    %v2423 = vunpack.c.h.b16 %v2117
    %v2424 = vunpack.c.l.b16 %v2118
    %v2425 = vunpack.c.h.b16 %v2118
    %v2426 = vunpack.c.l.b16 %v2119
    %v2427 = vunpack.c.h.b16 %v2119
    %v2428 = vunpack.c.l.b16 %v2120
    %v2429 = vunpack.c.h.b16 %v2120
    %v2430 = vunpack.c.l.b16 %v2121
    %v2431 = vunpack.c.h.b16 %v2121
    %v2432 = vunpack.c.l.b16 %v2122
    %v2433 = vunpack.c.h.b16 %v2122
    %v2434 = vunpack.c.l.b16 %v2123
    %v2435 = vunpack.c.h.b16 %v2123
    %v2436 = vunpack.c.l.b16 %v2124
    %v2437 = vunpack.c.h.b16 %v2124
    %v2438 = vunpack.c.l.b16 %v2125
    %v2439 = vunpack.c.h.b16 %v2125
    %v2440 = vunpack.c.l.b16 %v2126
    %v2441 = vunpack.c.h.b16 %v2126
    %v2442 = vunpack.c.l.b16 %v2127
    %v2443 = vunpack.c.h.b16 %v2127
    %v2444 = vunpack.c.l.b16 %v2128
    %v2445 = vunpack.c.h.b16 %v2128
    %v2446 = vunpack.c.l.b16 %v2129
    %v2447 = vunpack.c.h.b16 %v2129
    %v2448 = vunpack.c.l.b16 %v2130
    %v2449 = vunpack.c.h.b16 %v2130
    %v2450 = vunpack.c.l.b16 %v2131
    %v2451 = vunpack.c.h.b16 %v2131
    %v2452 = vunpack.c.l.b16 %v2132
    %v2453 = vunpack.c.h.b16 %v2132
    %v2454 = vunpack.c.l.b16 %v2133
    %v2455 = vunpack.c.h.b16 %v2133
    %v2456 = vunpack.c.l.b16 %v2134
    %v2457 = vunpack.c.h.b16 %v2134
    %v2458 = vunpack.c.l.b16 %v2135
    %v2459 = vunpack.c.h.b16 %v2135
    %v2460 = vunpack.c.l.b16 %v2136
    %v2461 = vunpack.c.h.b16 %v2136
    %v2462 = vunpack.c.l.b16 %v2137
    %v2463 = vunpack.c.h.b16 %v2137
    %v2464 = vunpack.c.l.b16 %v2138
    %v2465 = vunpack.c.h.b16 %v2138
    %v2466 = vunpack.c.l.b16 %v2139
    %v2467 = vunpack.c.h.b16 %v2139
    %v2468 = vunpack.c.l.b16 %v2140
    %v2469 = vunpack.c.h.b16 %v2140
    %v2470 = vunpack.c.l.b16 %v2141
    %v2471 = vunpack.c.h.b16 %v2141
    %v2472 = vunpack.c.l.b16 %v2142
    %v2473 = vunpack.c.h.b16 %v2142
    %v2474 = vunpack.c.l.b16 %v2143
    %v2475 = vunpack.c.h.b16 %v2143
    %v2476 = vunpack.c.l.b16 %v2144
    %v2477 = vunpack.c.h.b16 %v2144
    %v2478 = vunpack.c.l.b16 %v2145
    %v2479 = vunpack.c.h.b16 %v2145
    %v2480 = vunpack.c.l.b16 %v2146
    %v2481 = vunpack.c.h.b16 %v2146
    %v2482 = vunpack.c.l.b16 %v2147
    %v2483 = vunpack.c.h.b16 %v2147
    %v2484 = vunpack.c.l.b16 %v2148
    %v2485 = vunpack.c.h.b16 %v2148
    %v2486 = vunpack.c.l.b16 %v2149
    %v2487 = vunpack.c.h.b16 %v2149
    %v2488 = vunpack.c.l.b16 %v2150
    %v2489 = vunpack.c.h.b16 %v2150
    %v2490 = vunpack.c.l.b16 %v2151
    %v2491 = vunpack.c.h.b16 %v2151
    %v2492 = vunpack.c.l.b16 %v2152
    %v2493 = vunpack.c.h.b16 %v2152
    %v2494 = vunpack.c.l.b16 %v2153
    %v2495 = vunpack.c.h.b16 %v2153
    %v2496 = vunpack.c.l.b16 %v2154
    %v2497 = vunpack.c.h.b16 %v2154
    %v2498 = vunpack.c.l.b16 %v2155
    %v2499 = vunpack.c.h.b16 %v2155
    %v2500 = vunpack.c.l.b16 %v2156
    %v2501 = vunpack.c.h.b16 %v2156
    %v2502 = vunpack.c.l.b16 %v2157
    %v2503 = vunpack.c.h.b16 %v2157
    %v2504 = vunpack.c.l.b16 %v2158
    %v2505 = vunpack.c.h.b16 %v2158
    %v2506 = vunpack.c.l.b16 %v2159
    %v2507 = vunpack.c.h.b16 %v2159
    %v2508 = vunpack.c.l.b16 %v2160
    %v2509 = vunpack.c.h.b16 %v2160
    %v2510 = vunpack.c.l.b16 %v2161
    %v2511 = vunpack.c.h.b16 %v2161
    %v2512 = vunpack.c.l.b16 %v2162
    %v2513 = vunpack.c.h.b16 %v2162
    %v2514 = vunpack.c.l.b16 %v2163
    %v2515 = vunpack.c.h.b16 %v2163
    %v2516 = vunpack.c.l.b16 %v2164
    %v2517 = vunpack.c.h.b16 %v2164
    %v2518 = vunpack.c.l.b16 %v2165
    %v2519 = vunpack.c.h.b16 %v2165
    %v2520 = vunpack.c.l.b16 %v2166
    %v2521 = vunpack.c.h.b16 %v2166
    %v2522 = vunpack.c.l.b16 %v2167
    %v2523 = vunpack.c.h.b16 %v2167
    %v2524 = vunpack.c.l.b16 %v2168
    %v2525 = vunpack.c.h.b16 %v2168
    %v2526 = vunpack.c.l.b16 %v2169
    %v2527 = vunpack.c.h.b16 %v2169
    %v2528 = vunpack.c.l.b16 %v2170
    %v2529 = vunpack.c.h.b16 %v2170
    %v2530 = vunpack.c.l.b16 %v2171
    %v2531 = vunpack.c.h.b16 %v2171
    %v2532 = vunpack.c.l.b16 %v2172
    %v2533 = vunpack.c.h.b16 %v2172
    %v2534 = vunpack.c.l.b16 %v2173
    %v2535 = vunpack.c.h.b16 %v2173
    %v2536 = vunpack.c.l.b16 %v2174
    %v2537 = vunpack.c.h.b16 %v2174
    %v2538 = vunpack.c.l.b16 %v2175
    %v2539 = vunpack.c.h.b16 %v2175
    %v2540 = vunpack.c.l.b16 %v2176
    %v2541 = vunpack.c.h.b16 %v2176
    %v2542 = vunpack.c.l.b16 %v2177
    %v2543 = vunpack.c.h.b16 %v2177
    %v2544 = vunpack.c.l.b16 %v2178
    %v2545 = vunpack.c.h.b16 %v2178
    %v2546 = vunpack.c.l.b16 %v2179
    %v2547 = vunpack.c.h.b16 %v2179
    %v2548 = vunpack.c.l.b16 %v2180
    %v2549 = vunpack.c.h.b16 %v2180
    %v2550 = vunpack.c.l.b16 %v2181
    %v2551 = vunpack.c.h.b16 %v2181
    %v2552 = vunpack.c.l.b16 %v2182
    %v2553 = vunpack.c.h.b16 %v2182
    %v2554 = vunpack.c.l.b16 %v2183
    %v2555 = vunpack.c.h.b16 %v2183
    %v2556 = vunpack.c.l.b16 %v2184
    %v2557 = vunpack.c.h.b16 %v2184
    %v2558 = vunpack.c.l.b16 %v2185
    %v2559 = vunpack.c.h.b16 %v2185
    %v2560 = vunpack.c.l.b16 %v2186
    %v2561 = vunpack.c.h.b16 %v2186
    %v2562 = vunpack.c.l.b16 %v2187
    %v2563 = vunpack.c.h.b16 %v2187
    %v2564 = vunpack.c.l.b16 %v2188
    %v2565 = vunpack.c.h.b16 %v2188
    %v2566 = vunpack.c.l.b16 %v2189
    %v2567 = vunpack.c.h.b16 %v2189
    %v2568 = vunpack.c.l.b16 %v2190
    %v2569 = vunpack.c.h.b16 %v2190
    %v2570 = vunpack.c.l.b16 %v2191
    %v2571 = vunpack.c.h.b16 %v2191
    %v2572 = vunpack.c.l.b16 %v2192
    %v2573 = vunpack.c.h.b16 %v2192
    %v2574 = vunpack.c.l.b16 %v2193
    %v2575 = vunpack.c.h.b16 %v2193
    %v2576 = vunpack.c.l.b16 %v2194
    %v2577 = vunpack.c.h.b16 %v2194
    %v2578 = vunpack.c.l.b16 %v2195
    %v2579 = vunpack.c.h.b16 %v2195
    %v2580 = vunpack.c.l.b16 %v2196
    %v2581 = vunpack.c.h.b16 %v2196
    %v2582 = vunpack.c.l.b16 %v2197
    %v2583 = vunpack.c.h.b16 %v2197
    %v2584 = vunpack.c.l.b16 %v2198
    %v2585 = vunpack.c.h.b16 %v2198
    %v2586 = vunpack.c.l.b16 %v2199
    %v2587 = vunpack.c.h.b16 %v2199
    %v2588 = vunpack.c.l.b16 %v2200
    %v2589 = vunpack.c.h.b16 %v2200
    %v2590 = vunpack.c.l.b16 %v2201
    %v2591 = vunpack.c.h.b16 %v2201
    %v2592 = vunpack.c.l.b16 %v2202
    %v2593 = vunpack.c.h.b16 %v2202
    %v2594 = vunpack.c.l.b16 %v2203
    %v2595 = vunpack.c.h.b16 %v2203
    %v2596 = vunpack.c.l.b16 %v2204
    %v2597 = vunpack.c.h.b16 %v2204
    %v2598 = vunpack.c.l.b16 %v2205
    %v2599 = vunpack.c.h.b16 %v2205
    %v2600 = vunpack.c.l.b16 %v2206
    %v2601 = vunpack.c.h.b16 %v2206
    %v2602 = vunpack.c.l.b16 %v2207
    %v2603 = vunpack.c.h.b16 %v2207
    %v2604 = vunpack.c.l.b16 %v2208
    %v2605 = vunpack.c.h.b16 %v2208
    %v2606 = vunpack.c.l.b16 %v2209
    %v2607 = vunpack.c.h.b16 %v2209
    %v2608 = vunpack.c.l.b16 %v2210
    %v2609 = vunpack.c.h.b16 %v2210
    %v2610 = vunpack.c.l.b16 %v2211
    %v2611 = vunpack.c.h.b16 %v2211
    %v2612 = vpack.c.b16 %v2360, %v2356
    %v2613 = vpack.c.b16 %v2361, %v2357
    %v2614 = vpack.c.b16 %v2362, %v2358
    %v2615 = vpack.c.b16 %v2363, %v2359
    %v2616 = vpack.c.b16 %v2368, %v2364
    %v2617 = vpack.c.b16 %v2369, %v2365
    %v2618 = vpack.c.b16 %v2370, %v2366
    %v2619 = vpack.c.b16 %v2371, %v2367
    %v2620 = vpack.c.b16 %v2376, %v2372
    %v2621 = vpack.c.b16 %v2377, %v2373
    %v2622 = vpack.c.b16 %v2378, %v2374
    %v2623 = vpack.c.b16 %v2379, %v2375
    %v2624 = vpack.c.b16 %v2384, %v2380
    %v2625 = vpack.c.b16 %v2385, %v2381
    %v2626 = vpack.c.b16 %v2386, %v2382
    %v2627 = vpack.c.b16 %v2387, %v2383
    %v2628 = vpack.c.b16 %v2392, %v2388
    %v2629 = vpack.c.b16 %v2393, %v2389
    %v2630 = vpack.c.b16 %v2394, %v2390
    %v2631 = vpack.c.b16 %v2395, %v2391
    %v2632 = vpack.c.b16 %v2400, %v2396
    %v2633 = vpack.c.b16 %v2401, %v2397
    %v2634 = vpack.c.b16 %v2402, %v2398
    %v2635 = vpack.c.b16 %v2403, %v2399
    %v2636 = vpack.c.b16 %v2408, %v2404
    %v2637 = vpack.c.b16 %v2409, %v2405
    %v2638 = vpack.c.b16 %v2410, %v2406
    %v2639 = vpack.c.b16 %v2411, %v2407
    %v2640 = vpack.c.b16 %v2416, %v2412
    %v2641 = vpack.c.b16 %v2417, %v2413
    %v2642 = vpack.c.b16 %v2418, %v2414
    %v2643 = vpack.c.b16 %v2419, %v2415
    %v2644 = vpack.c.b16 %v2424, %v2420
    %v2645 = vpack.c.b16 %v2425, %v2421
    %v2646 = vpack.c.b16 %v2426, %v2422
    %v2647 = vpack.c.b16 %v2427, %v2423
    %v2648 = vpack.c.b16 %v2432, %v2428
    %v2649 = vpack.c.b16 %v2433, %v2429
    %v2650 = vpack.c.b16 %v2434, %v2430
    %v2651 = vpack.c.b16 %v2435, %v2431
    %v2652 = vpack.c.b16 %v2440, %v2436
    %v2653 = vpack.c.b16 %v2441, %v2437
    %v2654 = vpack.c.b16 %v2442, %v2438
    %v2655 = vpack.c.b16 %v2443, %v2439
    %v2656 = vpack.c.b16 %v2448, %v2444
    %v2657 = vpack.c.b16 %v2449, %v2445
    %v2658 = vpack.c.b16 %v2450, %v2446
    %v2659 = vpack.c.b16 %v2451, %v2447
    %v2660 = vpack.c.b16 %v2456, %v2452
    %v2661 = vpack.c.b16 %v2457, %v2453
    %v2662 = vpack.c.b16 %v2458, %v2454
    %v2663 = vpack.c.b16 %v2459, %v2455
    %v2664 = vpack.c.b16 %v2464, %v2460
    %v2665 = vpack.c.b16 %v2465, %v2461
    %v2666 = vpack.c.b16 %v2466, %v2462
    %v2667 = vpack.c.b16 %v2467, %v2463
    %v2668 = vpack.c.b16 %v2472, %v2468
    %v2669 = vpack.c.b16 %v2473, %v2469
    %v2670 = vpack.c.b16 %v2474, %v2470
    %v2671 = vpack.c.b16 %v2475, %v2471
    %v2672 = vpack.c.b16 %v2480, %v2476
    %v2673 = vpack.c.b16 %v2481, %v2477
    %v2674 = vpack.c.b16 %v2482, %v2478
    %v2675 = vpack.c.b16 %v2483, %v2479
    %v2676 = vpack.c.b16 %v2488, %v2484
    %v2677 = vpack.c.b16 %v2489, %v2485
    %v2678 = vpack.c.b16 %v2490, %v2486
    %v2679 = vpack.c.b16 %v2491, %v2487
    %v2680 = vpack.c.b16 %v2496, %v2492
    %v2681 = vpack.c.b16 %v2497, %v2493
    %v2682 = vpack.c.b16 %v2498, %v2494
    %v2683 = vpack.c.b16 %v2499, %v2495
    %v2684 = vpack.c.b16 %v2504, %v2500
    %v2685 = vpack.c.b16 %v2505, %v2501
    %v2686 = vpack.c.b16 %v2506, %v2502
    %v2687 = vpack.c.b16 %v2507, %v2503
    %v2688 = vpack.c.b16 %v2512, %v2508
    %v2689 = vpack.c.b16 %v2513, %v2509
    %v2690 = vpack.c.b16 %v2514, %v2510
    %v2691 = vpack.c.b16 %v2515, %v2511
    %v2692 = vpack.c.b16 %v2520, %v2516
    %v2693 = vpack.c.b16 %v2521, %v2517
    %v2694 = vpack.c.b16 %v2522, %v2518
    %v2695 = vpack.c.b16 %v2523, %v2519
    %v2696 = vpack.c.b16 %v2528, %v2524
    %v2697 = vpack.c.b16 %v2529, %v2525
    %v2698 = vpack.c.b16 %v2530, %v2526
    %v2699 = vpack.c.b16 %v2531, %v2527
    %v2700 = vpack.c.b16 %v2536, %v2532
    %v2701 = vpack.c.b16 %v2537, %v2533
    %v2702 = vpack.c.b16 %v2538, %v2534
    %v2703 = vpack.c.b16 %v2539, %v2535
    %v2704 = vpack.c.b16 %v2544, %v2540
    %v2705 = vpack.c.b16 %v2545, %v2541
    %v2706 = vpack.c.b16 %v2546, %v2542
    %v2707 = vpack.c.b16 %v2547, %v2543
    %v2708 = vpack.c.b16 %v2552, %v2548
    %v2709 = vpack.c.b16 %v2553, %v2549
    %v2710 = vpack.c.b16 %v2554, %v2550
    %v2711 = vpack.c.b16 %v2555, %v2551
    %v2712 = vpack.c.b16 %v2560, %v2556
    %v2713 = vpack.c.b16 %v2561, %v2557
    %v2714 = vpack.c.b16 %v2562, %v2558
    %v2715 = vpack.c.b16 %v2563, %v2559
    %v2716 = vpack.c.b16 %v2568, %v2564
    %v2717 = vpack.c.b16 %v2569, %v2565
    %v2718 = vpack.c.b16 %v2570, %v2566
    %v2719 = vpack.c.b16 %v2571, %v2567
    %v2720 = vpack.c.b16 %v2576, %v2572
    %v2721 = vpack.c.b16 %v2577, %v2573
    %v2722 = vpack.c.b16 %v2578, %v2574
    %v2723 = vpack.c.b16 %v2579, %v2575
    %v2724 = vpack.c.b16 %v2584, %v2580
    %v2725 = vpack.c.b16 %v2585, %v2581
    %v2726 = vpack.c.b16 %v2586, %v2582
    %v2727 = vpack.c.b16 %v2587, %v2583
    %v2728 = vpack.c.b16 %v2592, %v2588
    %v2729 = vpack.c.b16 %v2593, %v2589
    %v2730 = vpack.c.b16 %v2594, %v2590
    %v2731 = vpack.c.b16 %v2595, %v2591
    %v2732 = vpack.c.b16 %v2600, %v2596
    %v2733 = vpack.c.b16 %v2601, %v2597
    %v2734 = vpack.c.b16 %v2602, %v2598
    %v2735 = vpack.c.b16 %v2603, %v2599
    %v2736 = vpack.c.b16 %v2608, %v2604
    %v2737 = vpack.c.b16 %v2609, %v2605
    %v2738 = vpack.c.b16 %v2610, %v2606
    %v2739 = vpack.c.b16 %v2611, %v2607
    %2868 = vmatprep.subr.bf16.mxu0 %v2613
    %2869 = vmatpush1.bf16.msra.mxu0 %v2612
    %2870 = vmatprep.subr.bf16.mxu0 %v2617
    %2871 = vmatpush1.bf16.msra.mxu0 %v2616
    %2872 = vmatprep.subr.bf16.mxu0 %v2621
    %2873 = vmatpush1.bf16.msra.mxu0 %v2620
    %2874 = vmatprep.subr.bf16.mxu0 %v2625
    %2875 = vmatpush1.bf16.msra.mxu0 %v2624
    %2876 = vmatprep.subr.bf16.mxu0 %v2629
    %2877 = vmatpush1.bf16.msra.mxu0 %v2628
    %2878 = vmatprep.subr.bf16.mxu0 %v2633
    %2879 = vmatpush1.bf16.msra.mxu0 %v2632
    %2880 = vmatprep.subr.bf16.mxu0 %v2637
    %2881 = vmatpush1.bf16.msra.mxu0 %v2636
    %2882 = vmatprep.subr.bf16.mxu0 %v2641
    %2883 = vmatpush1.bf16.msra.mxu0 %v2640
    %2884 = vmatprep.subr.bf16.mxu0 %v2645
    %2885 = vmatpush1.bf16.msra.mxu0 %v2644
    %2886 = vmatprep.subr.bf16.mxu0 %v2649
    %2887 = vmatpush1.bf16.msra.mxu0 %v2648
    %2888 = vmatprep.subr.bf16.mxu0 %v2653
    %2889 = vmatpush1.bf16.msra.mxu0 %v2652
    %2890 = vmatprep.subr.bf16.mxu0 %v2657
    %2891 = vmatpush1.bf16.msra.mxu0 %v2656
    %2892 = vmatprep.subr.bf16.mxu0 %v2661
    %2893 = vmatpush1.bf16.msra.mxu0 %v2660
    %2894 = vmatprep.subr.bf16.mxu0 %v2665
    %2895 = vmatpush1.bf16.msra.mxu0 %v2664
    %2896 = vmatprep.subr.bf16.mxu0 %v2669
    %2897 = vmatpush1.bf16.msra.mxu0 %v2668
    %2898 = vmatprep.subr.bf16.mxu0 %v2673
    %2899 = vmatpush1.bf16.msra.mxu0 %v2672
    %2900 = vmatprep.mubr.bf16.mxu0 %v2081
    %2901 = vmatmul.mubr.bf16.gmra.mrb[0].mxu0 %v2080
    %v2902 = vpop.f32.mrb[0].mxu0
    %v2903 = vadd.f32 %v2215, %v2902
    %v2904 = vpop.f32.mrb[0].mxu0
    %v2905 = vadd.f32 %v2219, %v2904
    %v2906 = vpop.f32.mrb[0].mxu0
    %v2907 = vpop.f32.mrb[0].mxu0
    %2908 = vdwg.mxu0
    %2909 = vmatprep.subr.bf16.mxu0 %v2677
    %2910 = vmatpush1.bf16.msra.mxu0 %v2676
    %2911 = vmatprep.subr.bf16.mxu0 %v2681
    %2912 = vmatpush1.bf16.msra.mxu0 %v2680
    %2913 = vmatprep.subr.bf16.mxu0 %v2685
    %2914 = vmatpush1.bf16.msra.mxu0 %v2684
    %2915 = vmatprep.subr.bf16.mxu0 %v2689
    %2916 = vmatpush1.bf16.msra.mxu0 %v2688
    %2917 = vmatprep.subr.bf16.mxu0 %v2693
    %2918 = vmatpush1.bf16.msra.mxu0 %v2692
    %2919 = vmatprep.subr.bf16.mxu0 %v2697
    %2920 = vmatpush1.bf16.msra.mxu0 %v2696
    %2921 = vmatprep.subr.bf16.mxu0 %v2701
    %2922 = vmatpush1.bf16.msra.mxu0 %v2700
    %2923 = vmatprep.subr.bf16.mxu0 %v2705
    %2924 = vmatpush1.bf16.msra.mxu0 %v2704
    %2925 = vmatprep.subr.bf16.mxu0 %v2709
    %2926 = vmatpush1.bf16.msra.mxu0 %v2708
    %2927 = vmatprep.subr.bf16.mxu0 %v2713
    %2928 = vmatpush1.bf16.msra.mxu0 %v2712
    %2929 = vmatprep.subr.bf16.mxu0 %v2717
    %2930 = vmatpush1.bf16.msra.mxu0 %v2716
    %2931 = vmatprep.subr.bf16.mxu0 %v2721
    %2932 = vmatpush1.bf16.msra.mxu0 %v2720
    %2933 = vmatprep.subr.bf16.mxu0 %v2725
    %2934 = vmatpush1.bf16.msra.mxu0 %v2724
    %2935 = vmatprep.subr.bf16.mxu0 %v2729
    %2936 = vmatpush1.bf16.msra.mxu0 %v2728
    %2937 = vmatprep.subr.bf16.mxu0 %v2733
    %2938 = vmatpush1.bf16.msra.mxu0 %v2732
    %2939 = vmatprep.subr.bf16.mxu0 %v2737
    %2940 = vmatpush1.bf16.msra.mxu0 %v2736
    %2941 = vmatprep.mubr.bf16.mxu0 %v2083
    %2942 = vmatmul.mubr.bf16.gmra.mrb[0].mxu0 %v2082
    %v2943 = vpop.f32.mrb[0].mxu0
    %v2944 = vadd.f32 %v2903, %v2943
    %v2945 = vpop.f32.mrb[0].mxu0
    %v2946 = vadd.f32 %v2905, %v2945
    %v2947 = vpop.f32.mrb[0].mxu0
    %v2948 = vpop.f32.mrb[0].mxu0
    %2949 = vdwg.mxu0
    %2950 = vmatprep.subr.bf16.mxu0 %v2615
    %2951 = vmatpush1.bf16.msra.mxu0 %v2614
    %2952 = vmatprep.subr.bf16.mxu0 %v2619
    %2953 = vmatpush1.bf16.msra.mxu0 %v2618
    %2954 = vmatprep.subr.bf16.mxu0 %v2623
    %2955 = vmatpush1.bf16.msra.mxu0 %v2622
    %2956 = vmatprep.subr.bf16.mxu0 %v2627
    %2957 = vmatpush1.bf16.msra.mxu0 %v2626
    %2958 = vmatprep.subr.bf16.mxu0 %v2631
    %2959 = vmatpush1.bf16.msra.mxu0 %v2630
    %2960 = vmatprep.subr.bf16.mxu0 %v2635
    %2961 = vmatpush1.bf16.msra.mxu0 %v2634
    %2962 = vmatprep.subr.bf16.mxu0 %v2639
    %2963 = vmatpush1.bf16.msra.mxu0 %v2638
    %2964 = vmatprep.subr.bf16.mxu0 %v2643
    %2965 = vmatpush1.bf16.msra.mxu0 %v2642
    %2966 = vmatprep.subr.bf16.mxu0 %v2647
    %2967 = vmatpush1.bf16.msra.mxu0 %v2646
    %2968 = vmatprep.subr.bf16.mxu0 %v2651
    %2969 = vmatpush1.bf16.msra.mxu0 %v2650
    %2970 = vmatprep.subr.bf16.mxu0 %v2655
    %2971 = vmatpush1.bf16.msra.mxu0 %v2654
    %2972 = vmatprep.subr.bf16.mxu0 %v2659
    %2973 = vmatpush1.bf16.msra.mxu0 %v2658
    %2974 = vmatprep.subr.bf16.mxu0 %v2663
    %2975 = vmatpush1.bf16.msra.mxu0 %v2662
    %2976 = vmatprep.subr.bf16.mxu0 %v2667
    %2977 = vmatpush1.bf16.msra.mxu0 %v2666
    %2978 = vmatprep.subr.bf16.mxu0 %v2671
    %2979 = vmatpush1.bf16.msra.mxu0 %v2670
    %2980 = vmatprep.subr.bf16.mxu0 %v2675
    %2981 = vmatpush1.bf16.msra.mxu0 %v2674
    %2982 = vmatprep.mubr.bf16.mxu0 %v2081
    %2983 = vmatmul.mubr.bf16.gmra.mrb[0].mxu0 %v2080
    %v2984 = vpop.f32.mrb[0].mxu0
    %v2985 = vadd.f32 %v2223, %v2984
    %v2986 = vpop.f32.mrb[0].mxu0
    %v2987 = vadd.f32 %v2227, %v2986
    %v2988 = vpop.f32.mrb[0].mxu0
    %v2989 = vpop.f32.mrb[0].mxu0
    %2990 = vdwg.mxu0
    %2991 = vmatprep.subr.bf16.mxu0 %v2679
    %2992 = vmatpush1.bf16.msra.mxu0 %v2678
    %2993 = vmatprep.subr.bf16.mxu0 %v2683
    %2994 = vmatpush1.bf16.msra.mxu0 %v2682
    %2995 = vmatprep.subr.bf16.mxu0 %v2687
    %2996 = vmatpush1.bf16.msra.mxu0 %v2686
    %2997 = vmatprep.subr.bf16.mxu0 %v2691
    %2998 = vmatpush1.bf16.msra.mxu0 %v2690
    %2999 = vmatprep.subr.bf16.mxu0 %v2695
    %3000 = vmatpush1.bf16.msra.mxu0 %v2694
    %3001 = vmatprep.subr.bf16.mxu0 %v2699
    %3002 = vmatpush1.bf16.msra.mxu0 %v2698
    %3003 = vmatprep.subr.bf16.mxu0 %v2703
    %3004 = vmatpush1.bf16.msra.mxu0 %v2702
    %3005 = vmatprep.subr.bf16.mxu0 %v2707
    %3006 = vmatpush1.bf16.msra.mxu0 %v2706
    %3007 = vmatprep.subr.bf16.mxu0 %v2711
    %3008 = vmatpush1.bf16.msra.mxu0 %v2710
    %3009 = vmatprep.subr.bf16.mxu0 %v2715
    %3010 = vmatpush1.bf16.msra.mxu0 %v2714
    %3011 = vmatprep.subr.bf16.mxu0 %v2719
    %3012 = vmatpush1.bf16.msra.mxu0 %v2718
    %3013 = vmatprep.subr.bf16.mxu0 %v2723
    %3014 = vmatpush1.bf16.msra.mxu0 %v2722
    %3015 = vmatprep.subr.bf16.mxu0 %v2727
    %3016 = vmatpush1.bf16.msra.mxu0 %v2726
    %3017 = vmatprep.subr.bf16.mxu0 %v2731
    %3018 = vmatpush1.bf16.msra.mxu0 %v2730
    %3019 = vmatprep.subr.bf16.mxu0 %v2735
    %3020 = vmatpush1.bf16.msra.mxu0 %v2734
    %3021 = vmatprep.subr.bf16.mxu0 %v2739
    %3022 = vmatpush1.bf16.msra.mxu0 %v2738
    %3023 = vmatprep.mubr.bf16.mxu0 %v2083
    %3024 = vmatmul.mubr.bf16.gmra.mrb[0].mxu0 %v2082
    %v3025 = vpop.f32.mrb[0].mxu0
    %v3026 = vadd.f32 %v2985, %v3025
    %v3027 = vpop.f32.mrb[0].mxu0
    %v3028 = vadd.f32 %v2987, %v3027
    %v3029 = vpop.f32.mrb[0].mxu0
    %v3030 = vpop.f32.mrb[0].mxu0
    %3031 = vdwg.mxu0
    %v3032 = vadd.f32 %v2944, %v2946
    %v3033 = vadd.f32 %v3032, %v3026
    %v3034 = vadd.f32 %v3033, %v3028
    %3035 = vadd.xlane.f32.xlu0 %v3034
    %v3036 = vpop.xlane.xlu0 %3035
    %v3037 = vmul.f32 %v3036, %v1990
    %v3038 = vsub.f32 %v2944, %v3037
    %v3039 = vsub.f32 %v2946, %v3037
    %v3040 = vsub.f32 %v3026, %v3037
    %v3041 = vsub.f32 %v3028, %v3037
    %v3042 = vmul.f32 %v3038, %v3038
    %v3043 = vmul.f32 %v3039, %v3039
    %v3044 = vmul.f32 %v3040, %v3040
    %v3045 = vmul.f32 %v3041, %v3041
    %v3046 = vadd.f32 %v3042, %v3043
    %v3047 = vadd.f32 %v3046, %v3044
    %v3048 = vadd.f32 %v3047, %v3045
    %3049 = vadd.xlane.f32.xlu0 %v3048
    %v3050 = vpop.xlane.xlu0 %3049
    %v3051 = vmul.f32 %v3050, %v1990
    %v3052 = vadd.f32 %v3051, 1e-05
    %v3053 = vrsqrt.pop %v3052
    %v3054 = vmul.f32 %v3038, %v3053
    %v3055 = vmul.f32 %v3039, %v3053
    %v3056 = vmul.f32 %v3040, %v3053
    %v3057 = vmul.f32 %v3041, %v3053
    %v3058 = vlaneseq
    %v3059 = vshrl.u32 %v3058, 7
    %v3060 = vsub.s32 4, %v3059
    %v3061 = vrot.slane %v101, %v3060
    %v3062 = vlaneseq
    %v3063 = vshrl.u32 %v3062, 7
    %v3064 = vsub.s32 4, %v3063
    %v3065 = vrot.slane %v102, %v3064
    %v3066 = vlaneseq
    %v3067 = vshrl.u32 %v3066, 7
    %v3068 = vsub.s32 4, %v3067
    %v3069 = vrot.slane %v103, %v3068
    %v3070 = vlaneseq
    %v3071 = vshrl.u32 %v3070, 7
    %v3072 = vsub.s32 4, %v3071
    %v3073 = vrot.slane %v104, %v3072
    %v3074 = vmul.f32 %v3054, %v3061
    %v3075 = vmul.f32 %v3055, %v3065
    %v3076 = vmul.f32 %v3056, %v3069
    %v3077 = vmul.f32 %v3057, %v3073
    %v3078 = vlaneseq
    %v3079 = vshrl.u32 %v3078, 7
    %v3080 = vsub.s32 5, %v3079
    %v3081 = vrot.slane %v101, %v3080
    %v3082 = vlaneseq
    %v3083 = vshrl.u32 %v3082, 7
    %v3084 = vsub.s32 5, %v3083
    %v3085 = vrot.slane %v102, %v3084
    %v3086 = vlaneseq
    %v3087 = vshrl.u32 %v3086, 7
    %v3088 = vsub.s32 5, %v3087
    %v3089 = vrot.slane %v103, %v3088
    %v3090 = vlaneseq
    %v3091 = vshrl.u32 %v3090, 7
    %v3092 = vsub.s32 5, %v3091
    %v3093 = vrot.slane %v104, %v3092
    %v3094 = vadd.f32 %v3074, %v3081
    %v3095 = vadd.f32 %v3075, %v3085
    %v3096 = vadd.f32 %v3076, %v3089
    %v3097 = vadd.f32 %v3077, %v3093
    %v3098 = vxor.u32 %v3094, 2147483648
    %v3099 = vxor.u32 %v3095, 2147483648
    %v3100 = vxor.u32 %v3096, 2147483648
    %v3101 = vxor.u32 %v3097, 2147483648
    %v3102 = vmul.f32 %v3098, 1.442695
    %v3103 = vpow.pop %v3102
    %v3104 = vmul.f32 %v3099, 1.442695
    %v3105 = vpow.pop %v3104
    %v3106 = vmul.f32 %v3100, 1.442695
    %v3107 = vpow.pop %v3106
    %v3108 = vmul.f32 %v3101, 1.442695
    %v3109 = vpow.pop %v3108
    %v3110 = vadd.f32 %v3103, 1.0
    %v3111 = vadd.f32 %v3105, 1.0
    %v3112 = vadd.f32 %v3107, 1.0
    %v3113 = vadd.f32 %v3109, 1.0
    %v3114 = vrcp.pop %v3110
    %v3115 = vmul.f32 1.0, %v3114
    %v3116 = vrcp.pop %v3111
    %v3117 = vmul.f32 1.0, %v3116
    %v3118 = vrcp.pop %v3112
    %v3119 = vmul.f32 1.0, %v3118
    %v3120 = vrcp.pop %v3113
    %v3121 = vmul.f32 1.0, %v3120
    %v3122 = vmul.f32 %v3094, %v3115
    %v3123 = vmul.f32 %v3095, %v3117
    %v3124 = vmul.f32 %v3096, %v3119
    %v3125 = vmul.f32 %v3097, %v3121
    %v3126 = vpack.c.bf16 %v3122, %v3122
    %v3127 = vpack.c.bf16 %v3123, %v3123
    %v3128 = vpack.c.bf16 %v3124, %v3124
    %v3129 = vpack.c.bf16 %v3125, %v3125
    %v3130 = vld [vmem:[#allocation8] sm:$0xff]
    %v3131 = vld [vmem:[#allocation8 + $0x8] sm:$0xff]
    %v3132 = vld [vmem:[#allocation8 + $0x10] sm:$0xff]
    %v3133 = vld [vmem:[#allocation8 + $0x18] sm:$0xff]
    %v3134 = vld [vmem:[#allocation8 + $0x20] sm:$0xff]
    %v3135 = vld [vmem:[#allocation8 + $0x28] sm:$0xff]
    %v3136 = vld [vmem:[#allocation8 + $0x30] sm:$0xff]
    %v3137 = vld [vmem:[#allocation8 + $0x38] sm:$0xff]
    %v3138 = vld [vmem:[#allocation8 + $0x40] sm:$0xff]
    %v3139 = vld [vmem:[#allocation8 + $0x48] sm:$0xff]
    %v3140 = vld [vmem:[#allocation8 + $0x50] sm:$0xff]
    %v3141 = vld [vmem:[#allocation8 + $0x58] sm:$0xff]
    %v3142 = vld [vmem:[#allocation8 + $0x60] sm:$0xff]
    %v3143 = vld [vmem:[#allocation8 + $0x68] sm:$0xff]
    %v3144 = vld [vmem:[#allocation8 + $0x70] sm:$0xff]
    %v3145 = vld [vmem:[#allocation8 + $0x78] sm:$0xff]
    %v3146 = vld [vmem:[#allocation8 + $0x80] sm:$0xff]
    %v3147 = vld [vmem:[#allocation8 + $0x88] sm:$0xff]
    %v3148 = vld [vmem:[#allocation8 + $0x90] sm:$0xff]
    %v3149 = vld [vmem:[#allocation8 + $0x98] sm:$0xff]
    %v3150 = vld [vmem:[#allocation8 + $0xa0] sm:$0xff]
    %v3151 = vld [vmem:[#allocation8 + $0xa8] sm:$0xff]
    %v3152 = vld [vmem:[#allocation8 + $0xb0] sm:$0xff]
    %v3153 = vld [vmem:[#allocation8 + $0xb8] sm:$0xff]
    %v3154 = vld [vmem:[#allocation8 + $0xc0] sm:$0xff]
    %v3155 = vld [vmem:[#allocation8 + $0xc8] sm:$0xff]
    %v3156 = vld [vmem:[#allocation8 + $0xd0] sm:$0xff]
    %v3157 = vld [vmem:[#allocation8 + $0xd8] sm:$0xff]
    %v3158 = vld [vmem:[#allocation8 + $0xe0] sm:$0xff]
    %v3159 = vld [vmem:[#allocation8 + $0xe8] sm:$0xff]
    %v3160 = vld [vmem:[#allocation8 + $0xf0] sm:$0xff]
    %v3161 = vld [vmem:[#allocation8 + $0xf8] sm:$0xff]
    %v3162 = vld [vmem:[#allocation8 + $0x100] sm:$0xff]
    %v3163 = vld [vmem:[#allocation8 + $0x108] sm:$0xff]
    %v3164 = vld [vmem:[#allocation8 + $0x110] sm:$0xff]
    %v3165 = vld [vmem:[#allocation8 + $0x118] sm:$0xff]
    %v3166 = vld [vmem:[#allocation8 + $0x120] sm:$0xff]
    %v3167 = vld [vmem:[#allocation8 + $0x128] sm:$0xff]
    %v3168 = vld [vmem:[#allocation8 + $0x130] sm:$0xff]
    %v3169 = vld [vmem:[#allocation8 + $0x138] sm:$0xff]
    %v3170 = vld [vmem:[#allocation8 + $0x140] sm:$0xff]
    %v3171 = vld [vmem:[#allocation8 + $0x148] sm:$0xff]
    %v3172 = vld [vmem:[#allocation8 + $0x150] sm:$0xff]
    %v3173 = vld [vmem:[#allocation8 + $0x158] sm:$0xff]
    %v3174 = vld [vmem:[#allocation8 + $0x160] sm:$0xff]
    %v3175 = vld [vmem:[#allocation8 + $0x168] sm:$0xff]
    %v3176 = vld [vmem:[#allocation8 + $0x170] sm:$0xff]
    %v3177 = vld [vmem:[#allocation8 + $0x178] sm:$0xff]
    %v3178 = vld [vmem:[#allocation8 + $0x180] sm:$0xff]
    %v3179 = vld [vmem:[#allocation8 + $0x188] sm:$0xff]
    %v3180 = vld [vmem:[#allocation8 + $0x190] sm:$0xff]
    %v3181 = vld [vmem:[#allocation8 + $0x198] sm:$0xff]
    %v3182 = vld [vmem:[#allocation8 + $0x1a0] sm:$0xff]
    %v3183 = vld [vmem:[#allocation8 + $0x1a8] sm:$0xff]
    %v3184 = vld [vmem:[#allocation8 + $0x1b0] sm:$0xff]
    %v3185 = vld [vmem:[#allocation8 + $0x1b8] sm:$0xff]
    %v3186 = vld [vmem:[#allocation8 + $0x1c0] sm:$0xff]
    %v3187 = vld [vmem:[#allocation8 + $0x1c8] sm:$0xff]
    %v3188 = vld [vmem:[#allocation8 + $0x1d0] sm:$0xff]
    %v3189 = vld [vmem:[#allocation8 + $0x1d8] sm:$0xff]
    %v3190 = vld [vmem:[#allocation8 + $0x1e0] sm:$0xff]
    %v3191 = vld [vmem:[#allocation8 + $0x1e8] sm:$0xff]
    %v3192 = vld [vmem:[#allocation8 + $0x1f0] sm:$0xff]
    %v3193 = vld [vmem:[#allocation8 + $0x1f8] sm:$0xff]
    %v3194 = vlaneseq
    %v3195 = vshrl.u32 %v3194, 7
    %v3196 = vsub.s32 6, %v3195
    %v3197 = vrot.slane %v101, %v3196
    %v3198 = vlaneseq
    %v3199 = vshrl.u32 %v3198, 7
    %v3200 = vsub.s32 6, %v3199
    %v3201 = vrot.slane %v102, %v3200
    %v3266 = vunpack.c.l.b16 %v3130
    %v3267 = vunpack.c.h.b16 %v3130
    %v3268 = vunpack.c.l.b16 %v3131
    %v3269 = vunpack.c.h.b16 %v3131
    %v3270 = vunpack.c.l.b16 %v3132
    %v3271 = vunpack.c.h.b16 %v3132
    %v3272 = vunpack.c.l.b16 %v3133
    %v3273 = vunpack.c.h.b16 %v3133
    %v3274 = vunpack.c.l.b16 %v3134
    %v3275 = vunpack.c.h.b16 %v3134
    %v3276 = vunpack.c.l.b16 %v3135
    %v3277 = vunpack.c.h.b16 %v3135
    %v3278 = vunpack.c.l.b16 %v3136
    %v3279 = vunpack.c.h.b16 %v3136
    %v3280 = vunpack.c.l.b16 %v3137
    %v3281 = vunpack.c.h.b16 %v3137
    %v3282 = vunpack.c.l.b16 %v3138
    %v3283 = vunpack.c.h.b16 %v3138
    %v3284 = vunpack.c.l.b16 %v3139
    %v3285 = vunpack.c.h.b16 %v3139
    %v3286 = vunpack.c.l.b16 %v3140
    %v3287 = vunpack.c.h.b16 %v3140
    %v3288 = vunpack.c.l.b16 %v3141
    %v3289 = vunpack.c.h.b16 %v3141
    %v3290 = vunpack.c.l.b16 %v3142
    %v3291 = vunpack.c.h.b16 %v3142
    %v3292 = vunpack.c.l.b16 %v3143
    %v3293 = vunpack.c.h.b16 %v3143
    %v3294 = vunpack.c.l.b16 %v3144
    %v3295 = vunpack.c.h.b16 %v3144
    %v3296 = vunpack.c.l.b16 %v3145
    %v3297 = vunpack.c.h.b16 %v3145
    %v3298 = vunpack.c.l.b16 %v3146
    %v3299 = vunpack.c.h.b16 %v3146
    %v3300 = vunpack.c.l.b16 %v3147
    %v3301 = vunpack.c.h.b16 %v3147
    %v3302 = vunpack.c.l.b16 %v3148
    %v3303 = vunpack.c.h.b16 %v3148
    %v3304 = vunpack.c.l.b16 %v3149
    %v3305 = vunpack.c.h.b16 %v3149
    %v3306 = vunpack.c.l.b16 %v3150
    %v3307 = vunpack.c.h.b16 %v3150
    %v3308 = vunpack.c.l.b16 %v3151
    %v3309 = vunpack.c.h.b16 %v3151
    %v3310 = vunpack.c.l.b16 %v3152
    %v3311 = vunpack.c.h.b16 %v3152
    %v3312 = vunpack.c.l.b16 %v3153
    %v3313 = vunpack.c.h.b16 %v3153
    %v3314 = vunpack.c.l.b16 %v3154
    %v3315 = vunpack.c.h.b16 %v3154
    %v3316 = vunpack.c.l.b16 %v3155
    %v3317 = vunpack.c.h.b16 %v3155
    %v3318 = vunpack.c.l.b16 %v3156
    %v3319 = vunpack.c.h.b16 %v3156
    %v3320 = vunpack.c.l.b16 %v3157
    %v3321 = vunpack.c.h.b16 %v3157
    %v3322 = vunpack.c.l.b16 %v3158
    %v3323 = vunpack.c.h.b16 %v3158
    %v3324 = vunpack.c.l.b16 %v3159
    %v3325 = vunpack.c.h.b16 %v3159
    %v3326 = vunpack.c.l.b16 %v3160
    %v3327 = vunpack.c.h.b16 %v3160
    %v3328 = vunpack.c.l.b16 %v3161
    %v3329 = vunpack.c.h.b16 %v3161
    %v3330 = vunpack.c.l.b16 %v3162
    %v3331 = vunpack.c.h.b16 %v3162
    %v3332 = vunpack.c.l.b16 %v3163
    %v3333 = vunpack.c.h.b16 %v3163
    %v3334 = vunpack.c.l.b16 %v3164
    %v3335 = vunpack.c.h.b16 %v3164
    %v3336 = vunpack.c.l.b16 %v3165
    %v3337 = vunpack.c.h.b16 %v3165
    %v3338 = vunpack.c.l.b16 %v3166
    %v3339 = vunpack.c.h.b16 %v3166
    %v3340 = vunpack.c.l.b16 %v3167
    %v3341 = vunpack.c.h.b16 %v3167
    %v3342 = vunpack.c.l.b16 %v3168
    %v3343 = vunpack.c.h.b16 %v3168
    %v3344 = vunpack.c.l.b16 %v3169
    %v3345 = vunpack.c.h.b16 %v3169
    %v3346 = vunpack.c.l.b16 %v3170
    %v3347 = vunpack.c.h.b16 %v3170
    %v3348 = vunpack.c.l.b16 %v3171
    %v3349 = vunpack.c.h.b16 %v3171
    %v3350 = vunpack.c.l.b16 %v3172
    %v3351 = vunpack.c.h.b16 %v3172
    %v3352 = vunpack.c.l.b16 %v3173
    %v3353 = vunpack.c.h.b16 %v3173
    %v3354 = vunpack.c.l.b16 %v3174
    %v3355 = vunpack.c.h.b16 %v3174
    %v3356 = vunpack.c.l.b16 %v3175
    %v3357 = vunpack.c.h.b16 %v3175
    %v3358 = vunpack.c.l.b16 %v3176
    %v3359 = vunpack.c.h.b16 %v3176
    %v3360 = vunpack.c.l.b16 %v3177
    %v3361 = vunpack.c.h.b16 %v3177
    %v3362 = vunpack.c.l.b16 %v3178
    %v3363 = vunpack.c.h.b16 %v3178
    %v3364 = vunpack.c.l.b16 %v3179
    %v3365 = vunpack.c.h.b16 %v3179
    %v3366 = vunpack.c.l.b16 %v3180
    %v3367 = vunpack.c.h.b16 %v3180
    %v3368 = vunpack.c.l.b16 %v3181
    %v3369 = vunpack.c.h.b16 %v3181
    %v3370 = vunpack.c.l.b16 %v3182
    %v3371 = vunpack.c.h.b16 %v3182
    %v3372 = vunpack.c.l.b16 %v3183
    %v3373 = vunpack.c.h.b16 %v3183
    %v3374 = vunpack.c.l.b16 %v3184
    %v3375 = vunpack.c.h.b16 %v3184
    %v3376 = vunpack.c.l.b16 %v3185
    %v3377 = vunpack.c.h.b16 %v3185
    %v3378 = vunpack.c.l.b16 %v3186
    %v3379 = vunpack.c.h.b16 %v3186
    %v3380 = vunpack.c.l.b16 %v3187
    %v3381 = vunpack.c.h.b16 %v3187
    %v3382 = vunpack.c.l.b16 %v3188
    %v3383 = vunpack.c.h.b16 %v3188
    %v3384 = vunpack.c.l.b16 %v3189
    %v3385 = vunpack.c.h.b16 %v3189
    %v3386 = vunpack.c.l.b16 %v3190
    %v3387 = vunpack.c.h.b16 %v3190
    %v3388 = vunpack.c.l.b16 %v3191
    %v3389 = vunpack.c.h.b16 %v3191
    %v3390 = vunpack.c.l.b16 %v3192
    %v3391 = vunpack.c.h.b16 %v3192
    %v3392 = vunpack.c.l.b16 %v3193
    %v3393 = vunpack.c.h.b16 %v3193
    %v3394 = vpack.c.b16 %v3268, %v3266
    %v3395 = vpack.c.b16 %v3269, %v3267
    %v3396 = vpack.c.b16 %v3272, %v3270
    %v3397 = vpack.c.b16 %v3273, %v3271
    %v3398 = vpack.c.b16 %v3276, %v3274
    %v3399 = vpack.c.b16 %v3277, %v3275
    %v3400 = vpack.c.b16 %v3280, %v3278
    %v3401 = vpack.c.b16 %v3281, %v3279
    %v3402 = vpack.c.b16 %v3284, %v3282
    %v3403 = vpack.c.b16 %v3285, %v3283
    %v3404 = vpack.c.b16 %v3288, %v3286
    %v3405 = vpack.c.b16 %v3289, %v3287
    %v3406 = vpack.c.b16 %v3292, %v3290
    %v3407 = vpack.c.b16 %v3293, %v3291
    %v3408 = vpack.c.b16 %v3296, %v3294
    %v3409 = vpack.c.b16 %v3297, %v3295
    %v3410 = vpack.c.b16 %v3300, %v3298
    %v3411 = vpack.c.b16 %v3301, %v3299
    %v3412 = vpack.c.b16 %v3304, %v3302
    %v3413 = vpack.c.b16 %v3305, %v3303
    %v3414 = vpack.c.b16 %v3308, %v3306
    %v3415 = vpack.c.b16 %v3309, %v3307
    %v3416 = vpack.c.b16 %v3312, %v3310
    %v3417 = vpack.c.b16 %v3313, %v3311
    %v3418 = vpack.c.b16 %v3316, %v3314
    %v3419 = vpack.c.b16 %v3317, %v3315
    %v3420 = vpack.c.b16 %v3320, %v3318
    %v3421 = vpack.c.b16 %v3321, %v3319
    %v3422 = vpack.c.b16 %v3324, %v3322
    %v3423 = vpack.c.b16 %v3325, %v3323
    %v3424 = vpack.c.b16 %v3328, %v3326
    %v3425 = vpack.c.b16 %v3329, %v3327
    %v3426 = vpack.c.b16 %v3332, %v3330
    %v3427 = vpack.c.b16 %v3333, %v3331
    %v3428 = vpack.c.b16 %v3336, %v3334
    %v3429 = vpack.c.b16 %v3337, %v3335
    %v3430 = vpack.c.b16 %v3340, %v3338
    %v3431 = vpack.c.b16 %v3341, %v3339
    %v3432 = vpack.c.b16 %v3344, %v3342
    %v3433 = vpack.c.b16 %v3345, %v3343
    %v3434 = vpack.c.b16 %v3348, %v3346
    %v3435 = vpack.c.b16 %v3349, %v3347
    %v3436 = vpack.c.b16 %v3352, %v3350
    %v3437 = vpack.c.b16 %v3353, %v3351
    %v3438 = vpack.c.b16 %v3356, %v3354
    %v3439 = vpack.c.b16 %v3357, %v3355
    %v3440 = vpack.c.b16 %v3360, %v3358
    %v3441 = vpack.c.b16 %v3361, %v3359
    %v3442 = vpack.c.b16 %v3364, %v3362
    %v3443 = vpack.c.b16 %v3365, %v3363
    %v3444 = vpack.c.b16 %v3368, %v3366
    %v3445 = vpack.c.b16 %v3369, %v3367
    %v3446 = vpack.c.b16 %v3372, %v3370
    %v3447 = vpack.c.b16 %v3373, %v3371
    %v3448 = vpack.c.b16 %v3376, %v3374
    %v3449 = vpack.c.b16 %v3377, %v3375
    %v3450 = vpack.c.b16 %v3380, %v3378
    %v3451 = vpack.c.b16 %v3381, %v3379
    %v3452 = vpack.c.b16 %v3384, %v3382
    %v3453 = vpack.c.b16 %v3385, %v3383
    %v3454 = vpack.c.b16 %v3388, %v3386
    %v3455 = vpack.c.b16 %v3389, %v3387
    %v3456 = vpack.c.b16 %v3392, %v3390
    %v3457 = vpack.c.b16 %v3393, %v3391
    %3522 = vmatprep.subr.bf16.mxu0 %v3395
    %3523 = vmatpush1.bf16.msra.mxu0 %v3394
    %3524 = vmatprep.subr.bf16.mxu0 %v3397
    %3525 = vmatpush1.bf16.msra.mxu0 %v3396
    %3526 = vmatprep.subr.bf16.mxu0 %v3399
    %3527 = vmatpush1.bf16.msra.mxu0 %v3398
    %3528 = vmatprep.subr.bf16.mxu0 %v3401
    %3529 = vmatpush1.bf16.msra.mxu0 %v3400
    %3530 = vmatprep.subr.bf16.mxu0 %v3403
    %3531 = vmatpush1.bf16.msra.mxu0 %v3402
    %3532 = vmatprep.subr.bf16.mxu0 %v3405
    %3533 = vmatpush1.bf16.msra.mxu0 %v3404
    %3534 = vmatprep.subr.bf16.mxu0 %v3407
    %3535 = vmatpush1.bf16.msra.mxu0 %v3406
    %3536 = vmatprep.subr.bf16.mxu0 %v3409
    %3537 = vmatpush1.bf16.msra.mxu0 %v3408
    %3538 = vmatprep.subr.bf16.mxu0 %v3411
    %3539 = vmatpush1.bf16.msra.mxu0 %v3410
    %3540 = vmatprep.subr.bf16.mxu0 %v3413
    %3541 = vmatpush1.bf16.msra.mxu0 %v3412
    %3542 = vmatprep.subr.bf16.mxu0 %v3415
    %3543 = vmatpush1.bf16.msra.mxu0 %v3414
    %3544 = vmatprep.subr.bf16.mxu0 %v3417
    %3545 = vmatpush1.bf16.msra.mxu0 %v3416
    %3546 = vmatprep.subr.bf16.mxu0 %v3419
    %3547 = vmatpush1.bf16.msra.mxu0 %v3418
    %3548 = vmatprep.subr.bf16.mxu0 %v3421
    %3549 = vmatpush1.bf16.msra.mxu0 %v3420
    %3550 = vmatprep.subr.bf16.mxu0 %v3423
    %3551 = vmatpush1.bf16.msra.mxu0 %v3422
    %3552 = vmatprep.subr.bf16.mxu0 %v3425
    %3553 = vmatpush1.bf16.msra.mxu0 %v3424
    %3554 = vmatprep.mubr.bf16.mxu0 %v3127
    %3555 = vmatmul.mubr.bf16.gmra.mrb[0].mxu0 %v3126
    %v3556 = vpop.f32.mrb[0].mxu0
    %v3557 = vadd.f32 %v3197, %v3556
    %v3558 = vpop.f32.mrb[0].mxu0
    %v3559 = vadd.f32 %v3201, %v3558
    %v3560 = vpop.f32.mrb[0].mxu0
    %v3561 = vpop.f32.mrb[0].mxu0
    %3562 = vdwg.mxu0
    %3563 = vmatprep.subr.bf16.mxu0 %v3427
    %3564 = vmatpush1.bf16.msra.mxu0 %v3426
    %3565 = vmatprep.subr.bf16.mxu0 %v3429
    %3566 = vmatpush1.bf16.msra.mxu0 %v3428
    %3567 = vmatprep.subr.bf16.mxu0 %v3431
    %3568 = vmatpush1.bf16.msra.mxu0 %v3430
    %3569 = vmatprep.subr.bf16.mxu0 %v3433
    %3570 = vmatpush1.bf16.msra.mxu0 %v3432
    %3571 = vmatprep.subr.bf16.mxu0 %v3435
    %3572 = vmatpush1.bf16.msra.mxu0 %v3434
    %3573 = vmatprep.subr.bf16.mxu0 %v3437
    %3574 = vmatpush1.bf16.msra.mxu0 %v3436
    %3575 = vmatprep.subr.bf16.mxu0 %v3439
    %3576 = vmatpush1.bf16.msra.mxu0 %v3438
    %3577 = vmatprep.subr.bf16.mxu0 %v3441
    %3578 = vmatpush1.bf16.msra.mxu0 %v3440
    %3579 = vmatprep.subr.bf16.mxu0 %v3443
    %3580 = vmatpush1.bf16.msra.mxu0 %v3442
    %3581 = vmatprep.subr.bf16.mxu0 %v3445
    %3582 = vmatpush1.bf16.msra.mxu0 %v3444
    %3583 = vmatprep.subr.bf16.mxu0 %v3447
    %3584 = vmatpush1.bf16.msra.mxu0 %v3446
    %3585 = vmatprep.subr.bf16.mxu0 %v3449
    %3586 = vmatpush1.bf16.msra.mxu0 %v3448
    %3587 = vmatprep.subr.bf16.mxu0 %v3451
    %3588 = vmatpush1.bf16.msra.mxu0 %v3450
    %3589 = vmatprep.subr.bf16.mxu0 %v3453
    %3590 = vmatpush1.bf16.msra.mxu0 %v3452
    %3591 = vmatprep.subr.bf16.mxu0 %v3455
    %3592 = vmatpush1.bf16.msra.mxu0 %v3454
    %3593 = vmatprep.subr.bf16.mxu0 %v3457
    %3594 = vmatpush1.bf16.msra.mxu0 %v3456
    %3595 = vmatprep.mubr.bf16.mxu0 %v3129
    %3596 = vmatmul.mubr.bf16.gmra.mrb[0].mxu0 %v3128
    %v3597 = vpop.f32.mrb[0].mxu0
    %v3598 = vadd.f32 %v3557, %v3597
    %v3599 = vpop.f32.mrb[0].mxu0
    %v3600 = vadd.f32 %v3559, %v3599
    %v3601 = vpop.f32.mrb[0].mxu0
    %v3602 = vpop.f32.mrb[0].mxu0
    %3603 = vdwg.mxu0
    %3604 = vst [vmem:[#allocation11] sm:$0xff] %v3598
    %3605 = vst [vmem:[#allocation11 + $0x8] sm:$0xff] %v3600
    // Predicated region
    $region42: #{tpu_custom_call.1} parent=1 // pred_check
      _
    $region43: #{tpu_custom_call.1} parent=1 // pred_check_branch
      %3607 = sbr.rel (0) target = $region45
    $region44: #{tpu_custom_call.1} parent=1 // pred_region
      %s3609 = ssub.s32 256, 256
      %3610 = vsyncadd [#allocation4], %s3609
      %s3612 = sshll.u32 [#allocation11], 4
      %s3613 = int_to_ptr.vmem [resolvable:$true] %s3612
      %3615 = dma.vmem_to_hbm [thread:$0]  %s3613, 256, %s5, [#allocation4]
    $region45: #{tpu_custom_call.1} parent=1 // pred_fallthru
      _
    // Predicated region
    $region46: #{tpu_custom_call.1} parent=1 // pred_check
      _
    $region47: #{tpu_custom_call.1} parent=1 // pred_check_branch
      %3617 = sbr.rel (0) target = $region49
    $region48: #{tpu_custom_call.1} parent=1 // pred_region
      %3618 = dma.done [#allocation4], 256
    $region49: #{tpu_custom_call.1} parent=1 // pred_fallthru
      _
    %3619 = vsyncpa [#allocation3], 1
    %3620 = vsyncpa [#allocation6], 1
    %3621 = vsyncpa [#allocation9], 1
    %3622 = vsyncpa [#allocation4], 1

</llo_original>
